<compile_context>
chip_gen: v6e
topology: v6e:2x2x1
jax: 0.10.0
libtpu: 0.0.40
codegen_flags: <defaults>
</compile_context>

<pallas_src>
import jax
import jax.numpy as jnp
from jax.experimental import pallas as pl
from jax.experimental.pallas import tpu as pltpu

BN_EPS = 1e-5


# ----------------------------------------------------------------------------
# In-kernel helpers
# ----------------------------------------------------------------------------
def _step_and_last():
    step = pl.program_id(0) * pl.num_programs(1) + pl.program_id(1)
    last = pl.num_programs(0) * pl.num_programs(1) - 1
    return step, last


def _chan_update(v, step, mean_acc, m2_acc):
    """Chan/Welford parallel combine of per-channel (mean, M2) over the lane axis.

    v: (C, tm) f32 tile.  mean_acc / m2_acc: (C, 1) f32 VMEM scratch.
    Returns the running element count (f32 scalar) after this tile.
    """
    tm = v.shape[-1]
    tile_mean = jnp.mean(v, axis=-1, keepdims=True)                  # XLU reduce
    tile_m2 = jnp.sum((v - tile_mean) ** 2, axis=-1, keepdims=True)
    n_old = (step * tm).astype(jnp.float32)
    n_new = jnp.float32(tm)
    n_tot = n_old + n_new
    delta = tile_mean - mean_acc[...]
    mean_acc[...] = mean_acc[...] + delta * (n_new / n_tot)
    m2_acc[...] = m2_acc[...] + tile_m2 + (delta * delta) * (n_old * n_new / n_tot)
    return n_tot


def _finalize_affine(mean_acc, m2_acc, n_tot, scale_ref, shift_ref):
    """BN (mean, var) -> fused per-channel affine: y = x*scale + shift."""
    rstd = jax.lax.rsqrt(m2_acc[...] / n_tot + BN_EPS)               # EUP
    scale_ref[...] = rstd
    shift_ref[...] = -mean_acc[...] * rstd


# ----------------------------------------------------------------------------
# Pass 1: statistics of h = W1 @ x  ->  BN1 (scale, shift)
# ----------------------------------------------------------------------------
def _stats1_kernel(x_ref, w1_ref, scale1_ref, shift1_ref, mean_acc, m2_acc):
    step, last = _step_and_last()

    @pl.when(step == 0)
    def _():
        mean_acc[...] = jnp.zeros_like(mean_acc)
        m2_acc[...] = jnp.zeros_like(m2_acc)

    h = jnp.dot(w1_ref[...], x_ref[...], preferred_element_type=jnp.float32)
    n_tot = _chan_update(h, step, mean_acc, m2_acc)

    @pl.when(step == last)
    def _():
        _finalize_affine(mean_acc, m2_acc, n_tot, scale1_ref, shift1_ref)


# ----------------------------------------------------------------------------
# Pass 2: statistics of y = W2 @ relu(BN1(W1 @ x))  ->  BN2 (scale, shift)
# ----------------------------------------------------------------------------
def _stats2_kernel(x_ref, w1_ref, scale1_ref, shift1_ref, w2_ref,
                   scale2_ref, shift2_ref, mean_acc, m2_acc):
    step, last = _step_and_last()

    @pl.when(step == 0)
    def _():
        mean_acc[...] = jnp.zeros_like(mean_acc)
        m2_acc[...] = jnp.zeros_like(m2_acc)

    h = jnp.dot(w1_ref[...], x_ref[...], preferred_element_type=jnp.float32)
    hn = jnp.maximum(h * scale1_ref[...] + shift1_ref[...], 0.0)
    y = jnp.dot(w2_ref[...], hn, preferred_element_type=jnp.float32)
    n_tot = _chan_update(y, step, mean_acc, m2_acc)

    @pl.when(step == last)
    def _():
        _finalize_affine(mean_acc, m2_acc, n_tot, scale2_ref, shift2_ref)


# ----------------------------------------------------------------------------
# Pass 3: full forward with known statistics (fully parallel, lane-dense store)
# ----------------------------------------------------------------------------
def _final_kernel(x_ref, w1_ref, scale1_ref, shift1_ref, w2_ref,
                  scale2_ref, shift2_ref, o_ref):
    h = jnp.dot(w1_ref[...], x_ref[...], preferred_element_type=jnp.float32)
    hn = jnp.maximum(h * scale1_ref[...] + shift1_ref[...], 0.0)
    y = jnp.dot(w2_ref[...], hn, preferred_element_type=jnp.float32)
    o_ref[...] = jnp.maximum(y * scale2_ref[...] + shift2_ref[...], 0.0).astype(o_ref.dtype)


# ----------------------------------------------------------------------------
# Wrapper
# ----------------------------------------------------------------------------
def _pick_tile(hw, cap=2048):
    """Largest multiple-of-128 divisor of hw, capped; falls back to full hw."""
    best = 0
    for t in range(128, min(hw, cap) + 1, 128):
        if hw % t == 0:
            best = t
    return best if best > 0 else hw


@jax.jit
def mlp_pallas(x_nchw, w1, w2):
    """x_nchw: (N, Cin, H, W); w1: (hidden, Cin); w2: (Cout, hidden)."""
    N, Cin, H, W = x_nchw.shape
    hidden = w1.shape[0]
    Cout = w2.shape[0]
    HW = H * W
    x3 = x_nchw.reshape(N, Cin, HW)          # free reshape, no transpose

    tm = _pick_tile(HW)
    nm = HW // tm
    grid = (N, nm)

    x_spec = pl.BlockSpec((None, Cin, tm), lambda n, m: (n, 0, m))
    w1_spec = pl.BlockSpec((hidden, Cin), lambda n, m: (0, 0))
    w2_spec = pl.BlockSpec((Cout, hidden), lambda n, m: (0, 0))
    s1_spec = pl.BlockSpec((hidden, 1), lambda n, m: (0, 0))
    s2_spec = pl.BlockSpec((Cout, 1), lambda n, m: (0, 0))

    seq_params = pltpu.CompilerParams(
        dimension_semantics=("arbitrary", "arbitrary"))  # stats accumulate across grid
    par_params = pltpu.CompilerParams(
        dimension_semantics=("parallel", "parallel"))    # megacore can shard pass 3

    # Pass 1: BN1 statistics -> fused per-channel affine (scale1, shift1).
    scale1, shift1 = pl.pallas_call(
        _stats1_kernel,
        out_shape=(jax.ShapeDtypeStruct((hidden, 1), jnp.float32),
                   jax.ShapeDtypeStruct((hidden, 1), jnp.float32)),
        grid=grid,
        in_specs=[x_spec, w1_spec],
        out_specs=(s1_spec, s1_spec),
        scratch_shapes=[pltpu.VMEM((hidden, 1), jnp.float32),
                        pltpu.VMEM((hidden, 1), jnp.float32)],
        compiler_params=seq_params,
    )(x3, w1)

    # Pass 2: BN2 statistics (recomputes h; cheaper than an HBM intermediate).
    scale2, shift2 = pl.pallas_call(
        _stats2_kernel,
        out_shape=(jax.ShapeDtypeStruct((Cout, 1), jnp.float32),
                   jax.ShapeDtypeStruct((Cout, 1), jnp.float32)),
        grid=grid,
        in_specs=[x_spec, w1_spec, s1_spec, s1_spec, w2_spec],
        out_specs=(s2_spec, s2_spec),
        scratch_shapes=[pltpu.VMEM((Cout, 1), jnp.float32),
                        pltpu.VMEM((Cout, 1), jnp.float32)],
        compiler_params=seq_params,
    )(x3, w1, scale1, shift1, w2)

    # Pass 3: final output, lane-dense (Cout, tm) tiles into (N, Cout, HW).
    out3 = pl.pallas_call(
        _final_kernel,
        out_shape=jax.ShapeDtypeStruct((N, Cout, HW), x_nchw.dtype),
        grid=grid,
        in_specs=[x_spec, w1_spec, s1_spec, s1_spec, w2_spec, s2_spec, s2_spec],
        out_specs=pl.BlockSpec((None, Cout, tm), lambda n, m: (n, 0, m)),
        compiler_params=par_params,
    )(x3, w1, scale1, shift1, w2, scale2, shift2)

    return out3.reshape(N, Cout, H, W)


# ----------------------------------------------------------------------------
# Pure-JAX reference (faithful to the PyTorch module, incl. the 0.01 biases,
# which the BN mean-subtraction cancels — the assert below proves it).
# ----------------------------------------------------------------------------
def _mlp_ref(x_nchw, w1, b1, w2, b2):
    N, Cin, H, W = x_nchw.shape
    x = x_nchw.reshape(N, Cin, H * W)
    h = jnp.einsum("oc,ncm->nom", w1, x) + b1[None, :, None]
    mu = h.mean(axis=(0, 2), keepdims=True)
    var = ((h - mu) ** 2).mean(axis=(0, 2), keepdims=True)
    h = jnp.maximum((h - mu) * jax.lax.rsqrt(var + BN_EPS), 0.0)
    y = jnp.einsum("oc,ncm->nom", w2, h) + b2[None, :, None]
    mu = y.mean(axis=(0, 2), keepdims=True)
    var = ((y - mu) ** 2).mean(axis=(0, 2), keepdims=True)
    y = jnp.maximum((y - mu) * jax.lax.rsqrt(var + BN_EPS), 0.0)
    return y.reshape(N, -1, H, W)


def _xavier_uniform(key, fan_in, fan_out):
    # torch.nn.init.xavier_uniform_ for a 1x1 conv: U(-a, a), a = sqrt(6/(fi+fo)).
    # Stored as (fan_out, fan_in) so the kernel computes W @ x directly.
    a = (6.0 / (fan_in + fan_out)) ** 0.5
    return jax.random.uniform(key, (fan_out, fan_in), jnp.float32, -a, a)


if __name__ == "__main__":
    key = jax.random.PRNGKey(0)
    k_x, k_w1, k_w2 = jax.random.split(key, 3)

    N, Cin, H, W = 2, 4, 16, 16
    hidden, Cout = 32, 8

    x = jax.random.normal(k_x, (N, Cin, H, W), jnp.float32)

    w1 = _xavier_uniform(k_w1, Cin, hidden)            # (hidden, Cin)
    b1 = jnp.full((hidden,), 0.01, jnp.float32)        # bias.data.fill_(0.01)
    w2 = _xavier_uniform(k_w2, hidden, Cout)           # (Cout, hidden)
    b2 = jnp.full((Cout,), 0.01, jnp.float32)

    # TODO(synk): BatchNorm2d running_mean/running_var updates (training-mode
    # side effect in PyTorch) are not produced; only the forward activation is.
    out = jax.block_until_ready(mlp_pallas(x, w1, w2))
    ref = jax.block_until_ready(_mlp_ref(x, w1, b1, w2, b2))

    assert out.shape == (N, Cout, H, W), out.shape
    assert jnp.allclose(out, ref, atol=1e-4, rtol=1e-4), "mismatch vs pure-JAX ref"
    print("KERNEL_OK")
</pallas_src>

<mosaic_0001>
module attributes {stable_mosaic.version = 11 : i64} {
  func.func @_stats1_kernel(%arg0: i32, %arg1: i32, %arg2: memref<1x4x256xf32, #tpu.memory_space<vmem>>, %arg3: memref<32x4xf32, #tpu.memory_space<vmem>>, %arg4: memref<32x1xf32, #tpu.memory_space<vmem>>, %arg5: memref<32x1xf32, #tpu.memory_space<vmem>>, %arg6: memref<32x1xf32, #tpu.memory_space<vmem>>, %arg7: memref<32x1xf32, #tpu.memory_space<vmem>>) attributes {dimension_semantics = [#tpu.dimension_semantics<arbitrary>, #tpu.dimension_semantics<arbitrary>], iteration_bounds = array<i64: 2, 1>, scalar_prefetch = 0 : i64, scratch_operands = 2 : i64, tpu.core_type = #tpu.core_type<tc>, window_params = [{transform_indices = @transform_0, window_bounds = array<i64: 1, 4, 256>}, {pipeline_mode = #tpu.pipeline_mode<synchronous>, transform_indices = @transform_1, window_bounds = array<i64: 32, 4>}, {pipeline_mode = #tpu.pipeline_mode<synchronous>, transform_indices = @transform_2, window_bounds = array<i64: 32, 1>}, {pipeline_mode = #tpu.pipeline_mode<synchronous>, transform_indices = @transform_3, window_bounds = array<i64: 32, 1>}]} {
    %c1_i32 = arith.constant 1 : i32
    %0 = arith.muli %arg0, %c1_i32 : i32
    %1 = arith.addi %0, %arg1 : i32
    %c0_i32 = arith.constant 0 : i32
    %2 = arith.cmpi eq, %1, %c0_i32 : i32
    %3 = arith.extui %2 : i1 to i32
    %c0_i32_0 = arith.constant 0 : i32
    %4 = arith.cmpi ne, %3, %c0_i32_0 : i32
    scf.if %4 {
      %cst_23 = arith.constant 0.000000e+00 : f32
      %41 = vector.broadcast %cst_23 : f32 to vector<32x1xf32>
      %c0_24 = arith.constant 0 : index
      %c0_25 = arith.constant 0 : index
      %42 = vector.load %arg6[%c0_24, %c0_25] : memref<32x1xf32, #tpu.memory_space<vmem>>, vector<32x1xf32>
      tpu.vector_store %arg6[%c0_24, %c0_25], %41 {strides = array<i32>} : memref<32x1xf32, #tpu.memory_space<vmem>>, vector<32x1xf32>,
      %cst_26 = arith.constant 0.000000e+00 : f32
      %43 = vector.broadcast %cst_26 : f32 to vector<32x1xf32>
      %c0_27 = arith.constant 0 : index
      %c0_28 = arith.constant 0 : index
      %44 = vector.load %arg7[%c0_27, %c0_28] : memref<32x1xf32, #tpu.memory_space<vmem>>, vector<32x1xf32>
      tpu.vector_store %arg7[%c0_27, %c0_28], %43 {strides = array<i32>} : memref<32x1xf32, #tpu.memory_space<vmem>>, vector<32x1xf32>,
    } else {
    }
    %c0 = arith.constant 0 : index
    %c0_1 = arith.constant 0 : index
    %5 = vector.load %arg3[%c0, %c0_1] : memref<32x4xf32, #tpu.memory_space<vmem>>, vector<32x4xf32>
    %c0_2 = arith.constant 0 : index
    %c0_3 = arith.constant 0 : index
    %c0_4 = arith.constant 0 : index
    %6 = vector.load %arg2[%c0_2, %c0_3, %c0_4] : memref<1x4x256xf32, #tpu.memory_space<vmem>>, vector<1x4x256xf32>
    %7 = vector.shape_cast %6 : vector<1x4x256xf32> to vector<4x256xf32>
    %cst = arith.constant dense<0.000000e+00> : vector<32x256xf32>
    %8 = tpu.matmul %5, %7, %cst {dimension_numbers = #tpu.dot_dimension_numbers<[1], [0], [0], [1], [0, 0, 1, 1], [], []>} : vector<32x4xf32>, vector<4x256xf32>, vector<32x256xf32> -> vector<32x256xf32>
    %cst_5 = arith.constant dense<0.000000e+00> : vector<32xf32>
    %9 = vector.multi_reduction <add>, %8, %cst_5 [1] : vector<32x256xf32> to vector<32xf32>
    %10 = vector.shape_cast %9 : vector<32xf32> to vector<32x1xf32>
    %cst_6 = arith.constant 2.560000e+02 : f32
    %11 = vector.broadcast %cst_6 : f32 to vector<32x1xf32>
    %12 = arith.divf %10, %11 : vector<32x1xf32>
    %13 = vector.broadcast %12 : vector<32x1xf32> to vector<32x256xf32>
    %14 = arith.subf %8, %13 : vector<32x256xf32>
    %15 = arith.mulf %14, %14 : vector<32x256xf32>
    %cst_7 = arith.constant dense<0.000000e+00> : vector<32xf32>
    %16 = vector.multi_reduction <add>, %15, %cst_7 [1] : vector<32x256xf32> to vector<32xf32>
    %17 = vector.shape_cast %16 : vector<32xf32> to vector<32x1xf32>
    %c256_i32 = arith.constant 256 : i32
    %18 = arith.muli %1, %c256_i32 : i32
    %19 = arith.sitofp %18 : i32 to f32
    %cst_8 = arith.constant 2.560000e+02 : f32
    %20 = arith.addf %19, %cst_8 : f32
    %c0_9 = arith.constant 0 : index
    %c0_10 = arith.constant 0 : index
    %21 = vector.load %arg6[%c0_9, %c0_10] : memref<32x1xf32, #tpu.memory_space<vmem>>, vector<32x1xf32>
    %22 = arith.subf %12, %21 : vector<32x1xf32>
    %c0_11 = arith.constant 0 : index
    %c0_12 = arith.constant 0 : index
    %23 = vector.load %arg6[%c0_11, %c0_12] : memref<32x1xf32, #tpu.memory_space<vmem>>, vector<32x1xf32>
    %cst_13 = arith.constant 2.560000e+02 : f32
    %24 = arith.divf %cst_13, %20 : f32
    %25 = vector.broadcast %24 : f32 to vector<32x1xf32>
    %26 = arith.mulf %22, %25 : vector<32x1xf32>
    %27 = arith.addf %23, %26 : vector<32x1xf32>
    %c0_14 = arith.constant 0 : index
    %c0_15 = arith.constant 0 : index
    %28 = vector.load %arg6[%c0_14, %c0_15] : memref<32x1xf32, #tpu.memory_space<vmem>>, vector<32x1xf32>
    tpu.vector_store %arg6[%c0_14, %c0_15], %27 {strides = array<i32>} : memref<32x1xf32, #tpu.memory_space<vmem>>, vector<32x1xf32>,
    %c0_16 = arith.constant 0 : index
    %c0_17 = arith.constant 0 : index
    %29 = vector.load %arg7[%c0_16, %c0_17] : memref<32x1xf32, #tpu.memory_space<vmem>>, vector<32x1xf32>
    %30 = arith.addf %29, %17 : vector<32x1xf32>
    %31 = arith.mulf %22, %22 : vector<32x1xf32>
    %cst_18 = arith.constant 2.560000e+02 : f32
    %32 = arith.mulf %19, %cst_18 : f32
    %33 = arith.divf %32, %20 : f32
    %34 = vector.broadcast %33 : f32 to vector<32x1xf32>
    %35 = arith.mulf %31, %34 : vector<32x1xf32>
    %36 = arith.addf %30, %35 : vector<32x1xf32>
    %c0_19 = arith.constant 0 : index
    %c0_20 = arith.constant 0 : index
    %37 = vector.load %arg7[%c0_19, %c0_20] : memref<32x1xf32, #tpu.memory_space<vmem>>, vector<32x1xf32>
    tpu.vector_store %arg7[%c0_19, %c0_20], %36 {strides = array<i32>} : memref<32x1xf32, #tpu.memory_space<vmem>>, vector<32x1xf32>,
    %c1_i32_21 = arith.constant 1 : i32
    %38 = arith.cmpi eq, %1, %c1_i32_21 : i32
    %39 = arith.extui %38 : i1 to i32
    %c0_i32_22 = arith.constant 0 : i32
    %40 = arith.cmpi ne, %39, %c0_i32_22 : i32
    scf.if %40 {
      %c0_23 = arith.constant 0 : index
      %c0_24 = arith.constant 0 : index
      %41 = vector.load %arg7[%c0_23, %c0_24] : memref<32x1xf32, #tpu.memory_space<vmem>>, vector<32x1xf32>
      %42 = vector.broadcast %20 : f32 to vector<32x1xf32>
      %43 = arith.divf %41, %42 : vector<32x1xf32>
      %cst_25 = arith.constant 9.99999974E-6 : f32
      %44 = vector.broadcast %cst_25 : f32 to vector<32x1xf32>
      %45 = arith.addf %43, %44 : vector<32x1xf32>
      %46 = math.rsqrt %45 : vector<32x1xf32>
      %c0_26 = arith.constant 0 : index
      %c0_27 = arith.constant 0 : index
      %47 = vector.load %arg4[%c0_26, %c0_27] : memref<32x1xf32, #tpu.memory_space<vmem>>, vector<32x1xf32>
      tpu.vector_store %arg4[%c0_26, %c0_27], %46 {strides = array<i32>} : memref<32x1xf32, #tpu.memory_space<vmem>>, vector<32x1xf32>,
      %c0_28 = arith.constant 0 : index
      %c0_29 = arith.constant 0 : index
      %48 = vector.load %arg6[%c0_28, %c0_29] : memref<32x1xf32, #tpu.memory_space<vmem>>, vector<32x1xf32>
      %cst_30 = arith.constant 0.000000e+00 : f32
      %49 = vector.broadcast %cst_30 : f32 to vector<32x1xf32>
      %50 = arith.subf %49, %48 : vector<32x1xf32>
      %51 = arith.mulf %50, %46 : vector<32x1xf32>
      %c0_31 = arith.constant 0 : index
      %c0_32 = arith.constant 0 : index
      %52 = vector.load %arg5[%c0_31, %c0_32] : memref<32x1xf32, #tpu.memory_space<vmem>>, vector<32x1xf32>
      tpu.vector_store %arg5[%c0_31, %c0_32], %51 {strides = array<i32>} : memref<32x1xf32, #tpu.memory_space<vmem>>, vector<32x1xf32>,
    } else {
    }
    return
  }
  func.func @transform_0(%arg0: i32, %arg1: i32) -> (i32, i32, i32) {
    %c0_i32 = arith.constant 0 : i32
    %c0_i32_0 = arith.constant 0 : i32
    return %arg0, %c0_i32, %arg1 : i32, i32, i32
  }
  func.func @transform_1(%arg0: i32, %arg1: i32) -> (i32, i32) {
    %c0_i32 = arith.constant 0 : i32
    %c0_i32_0 = arith.constant 0 : i32
    %c0_i32_1 = arith.constant 0 : i32
    return %c0_i32, %c0_i32_0 : i32, i32
  }
  func.func @transform_2(%arg0: i32, %arg1: i32) -> (i32, i32) {
    %c0_i32 = arith.constant 0 : i32
    %c0_i32_0 = arith.constant 0 : i32
    %c0_i32_1 = arith.constant 0 : i32
    return %c0_i32, %c0_i32_0 : i32, i32
  }
  func.func @transform_3(%arg0: i32, %arg1: i32) -> (i32, i32) {
    %c0_i32 = arith.constant 0 : i32
    %c0_i32_0 = arith.constant 0 : i32
    %c0_i32_1 = arith.constant 0 : i32
    return %c0_i32, %c0_i32_0 : i32, i32
  }
}

module attributes {stable_mosaic.version = 11 : i64} {
  func.func @_stats2_kernel(%arg0: i32, %arg1: i32, %arg2: memref<1x4x256xf32, #tpu.memory_space<vmem>>, %arg3: memref<32x4xf32, #tpu.memory_space<vmem>>, %arg4: memref<32x1xf32, #tpu.memory_space<vmem>>, %arg5: memref<32x1xf32, #tpu.memory_space<vmem>>, %arg6: memref<8x32xf32, #tpu.memory_space<vmem>>, %arg7: memref<8x1xf32, #tpu.memory_space<vmem>>, %arg8: memref<8x1xf32, #tpu.memory_space<vmem>>, %arg9: memref<8x1xf32, #tpu.memory_space<vmem>>, %arg10: memref<8x1xf32, #tpu.memory_space<vmem>>) attributes {dimension_semantics = [#tpu.dimension_semantics<arbitrary>, #tpu.dimension_semantics<arbitrary>], iteration_bounds = array<i64: 2, 1>, scalar_prefetch = 0 : i64, scratch_operands = 2 : i64, tpu.core_type = #tpu.core_type<tc>, window_params = [{transform_indices = @transform_0, window_bounds = array<i64: 1, 4, 256>}, {pipeline_mode = #tpu.pipeline_mode<synchronous>, transform_indices = @transform_1, window_bounds = array<i64: 32, 4>}, {pipeline_mode = #tpu.pipeline_mode<synchronous>, transform_indices = @transform_2, window_bounds = array<i64: 32, 1>}, {pipeline_mode = #tpu.pipeline_mode<synchronous>, transform_indices = @transform_3, window_bounds = array<i64: 32, 1>}, {pipeline_mode = #tpu.pipeline_mode<synchronous>, transform_indices = @transform_4, window_bounds = array<i64: 8, 32>}, {pipeline_mode = #tpu.pipeline_mode<synchronous>, transform_indices = @transform_5, window_bounds = array<i64: 8, 1>}, {pipeline_mode = #tpu.pipeline_mode<synchronous>, transform_indices = @transform_6, window_bounds = array<i64: 8, 1>}]} {
    %c1_i32 = arith.constant 1 : i32
    %0 = arith.muli %arg0, %c1_i32 : i32
    %1 = arith.addi %0, %arg1 : i32
    %c0_i32 = arith.constant 0 : i32
    %2 = arith.cmpi eq, %1, %c0_i32 : i32
    %3 = arith.extui %2 : i1 to i32
    %c0_i32_0 = arith.constant 0 : i32
    %4 = arith.cmpi ne, %3, %c0_i32_0 : i32
    scf.if %4 {
      %cst_31 = arith.constant 0.000000e+00 : f32
      %51 = vector.broadcast %cst_31 : f32 to vector<8x1xf32>
      %c0_32 = arith.constant 0 : index
      %c0_33 = arith.constant 0 : index
      %52 = vector.load %arg9[%c0_32, %c0_33] : memref<8x1xf32, #tpu.memory_space<vmem>>, vector<8x1xf32>
      tpu.vector_store %arg9[%c0_32, %c0_33], %51 {strides = array<i32>} : memref<8x1xf32, #tpu.memory_space<vmem>>, vector<8x1xf32>,
      %cst_34 = arith.constant 0.000000e+00 : f32
      %53 = vector.broadcast %cst_34 : f32 to vector<8x1xf32>
      %c0_35 = arith.constant 0 : index
      %c0_36 = arith.constant 0 : index
      %54 = vector.load %arg10[%c0_35, %c0_36] : memref<8x1xf32, #tpu.memory_space<vmem>>, vector<8x1xf32>
      tpu.vector_store %arg10[%c0_35, %c0_36], %53 {strides = array<i32>} : memref<8x1xf32, #tpu.memory_space<vmem>>, vector<8x1xf32>,
    } else {
    }
    %c0 = arith.constant 0 : index
    %c0_1 = arith.constant 0 : index
    %5 = vector.load %arg3[%c0, %c0_1] : memref<32x4xf32, #tpu.memory_space<vmem>>, vector<32x4xf32>
    %c0_2 = arith.constant 0 : index
    %c0_3 = arith.constant 0 : index
    %c0_4 = arith.constant 0 : index
    %6 = vector.load %arg2[%c0_2, %c0_3, %c0_4] : memref<1x4x256xf32, #tpu.memory_space<vmem>>, vector<1x4x256xf32>
    %7 = vector.shape_cast %6 : vector<1x4x256xf32> to vector<4x256xf32>
    %cst = arith.constant dense<0.000000e+00> : vector<32x256xf32>
    %8 = tpu.matmul %5, %7, %cst {dimension_numbers = #tpu.dot_dimension_numbers<[1], [0], [0], [1], [0, 0, 1, 1], [], []>} : vector<32x4xf32>, vector<4x256xf32>, vector<32x256xf32> -> vector<32x256xf32>
    %c0_5 = arith.constant 0 : index
    %c0_6 = arith.constant 0 : index
    %9 = vector.load %arg4[%c0_5, %c0_6] : memref<32x1xf32, #tpu.memory_space<vmem>>, vector<32x1xf32>
    %10 = vector.broadcast %9 : vector<32x1xf32> to vector<32x256xf32>
    %11 = arith.mulf %8, %10 : vector<32x256xf32>
    %c0_7 = arith.constant 0 : index
    %c0_8 = arith.constant 0 : index
    %12 = vector.load %arg5[%c0_7, %c0_8] : memref<32x1xf32, #tpu.memory_space<vmem>>, vector<32x1xf32>
    %13 = vector.broadcast %12 : vector<32x1xf32> to vector<32x256xf32>
    %14 = arith.addf %11, %13 : vector<32x256xf32>
    %cst_9 = arith.constant 0.000000e+00 : f32
    %15 = vector.broadcast %cst_9 : f32 to vector<32x256xf32>
    %16 = arith.maximumf %14, %15 : vector<32x256xf32>
    %c0_10 = arith.constant 0 : index
    %c0_11 = arith.constant 0 : index
    %17 = vector.load %arg6[%c0_10, %c0_11] : memref<8x32xf32, #tpu.memory_space<vmem>>, vector<8x32xf32>
    %cst_12 = arith.constant dense<0.000000e+00> : vector<8x256xf32>
    %18 = tpu.matmul %17, %16, %cst_12 {dimension_numbers = #tpu.dot_dimension_numbers<[1], [0], [0], [1], [0, 0, 1, 1], [], []>} : vector<8x32xf32>, vector<32x256xf32>, vector<8x256xf32> -> vector<8x256xf32>
    %cst_13 = arith.constant dense<0.000000e+00> : vector<8xf32>
    %19 = vector.multi_reduction <add>, %18, %cst_13 [1] : vector<8x256xf32> to vector<8xf32>
    %20 = vector.shape_cast %19 : vector<8xf32> to vector<8x1xf32>
    %cst_14 = arith.constant 2.560000e+02 : f32
    %21 = vector.broadcast %cst_14 : f32 to vector<8x1xf32>
    %22 = arith.divf %20, %21 : vector<8x1xf32>
    %23 = vector.broadcast %22 : vector<8x1xf32> to vector<8x256xf32>
    %24 = arith.subf %18, %23 : vector<8x256xf32>
    %25 = arith.mulf %24, %24 : vector<8x256xf32>
    %cst_15 = arith.constant dense<0.000000e+00> : vector<8xf32>
    %26 = vector.multi_reduction <add>, %25, %cst_15 [1] : vector<8x256xf32> to vector<8xf32>
    %27 = vector.shape_cast %26 : vector<8xf32> to vector<8x1xf32>
    %c256_i32 = arith.constant 256 : i32
    %28 = arith.muli %1, %c256_i32 : i32
    %29 = arith.sitofp %28 : i32 to f32
    %cst_16 = arith.constant 2.560000e+02 : f32
    %30 = arith.addf %29, %cst_16 : f32
    %c0_17 = arith.constant 0 : index
    %c0_18 = arith.constant 0 : index
    %31 = vector.load %arg9[%c0_17, %c0_18] : memref<8x1xf32, #tpu.memory_space<vmem>>, vector<8x1xf32>
    %32 = arith.subf %22, %31 : vector<8x1xf32>
    %c0_19 = arith.constant 0 : index
    %c0_20 = arith.constant 0 : index
    %33 = vector.load %arg9[%c0_19, %c0_20] : memref<8x1xf32, #tpu.memory_space<vmem>>, vector<8x1xf32>
    %cst_21 = arith.constant 2.560000e+02 : f32
    %34 = arith.divf %cst_21, %30 : f32
    %35 = vector.broadcast %34 : f32 to vector<8x1xf32>
    %36 = arith.mulf %32, %35 : vector<8x1xf32>
    %37 = arith.addf %33, %36 : vector<8x1xf32>
    %c0_22 = arith.constant 0 : index
    %c0_23 = arith.constant 0 : index
    %38 = vector.load %arg9[%c0_22, %c0_23] : memref<8x1xf32, #tpu.memory_space<vmem>>, vector<8x1xf32>
    tpu.vector_store %arg9[%c0_22, %c0_23], %37 {strides = array<i32>} : memref<8x1xf32, #tpu.memory_space<vmem>>, vector<8x1xf32>,
    %c0_24 = arith.constant 0 : index
    %c0_25 = arith.constant 0 : index
    %39 = vector.load %arg10[%c0_24, %c0_25] : memref<8x1xf32, #tpu.memory_space<vmem>>, vector<8x1xf32>
    %40 = arith.addf %39, %27 : vector<8x1xf32>
    %41 = arith.mulf %32, %32 : vector<8x1xf32>
    %cst_26 = arith.constant 2.560000e+02 : f32
    %42 = arith.mulf %29, %cst_26 : f32
    %43 = arith.divf %42, %30 : f32
    %44 = vector.broadcast %43 : f32 to vector<8x1xf32>
    %45 = arith.mulf %41, %44 : vector<8x1xf32>
    %46 = arith.addf %40, %45 : vector<8x1xf32>
    %c0_27 = arith.constant 0 : index
    %c0_28 = arith.constant 0 : index
    %47 = vector.load %arg10[%c0_27, %c0_28] : memref<8x1xf32, #tpu.memory_space<vmem>>, vector<8x1xf32>
    tpu.vector_store %arg10[%c0_27, %c0_28], %46 {strides = array<i32>} : memref<8x1xf32, #tpu.memory_space<vmem>>, vector<8x1xf32>,
    %c1_i32_29 = arith.constant 1 : i32
    %48 = arith.cmpi eq, %1, %c1_i32_29 : i32
    %49 = arith.extui %48 : i1 to i32
    %c0_i32_30 = arith.constant 0 : i32
    %50 = arith.cmpi ne, %49, %c0_i32_30 : i32
    scf.if %50 {
      %c0_31 = arith.constant 0 : index
      %c0_32 = arith.constant 0 : index
      %51 = vector.load %arg10[%c0_31, %c0_32] : memref<8x1xf32, #tpu.memory_space<vmem>>, vector<8x1xf32>
      %52 = vector.broadcast %30 : f32 to vector<8x1xf32>
      %53 = arith.divf %51, %52 : vector<8x1xf32>
      %cst_33 = arith.constant 9.99999974E-6 : f32
      %54 = vector.broadcast %cst_33 : f32 to vector<8x1xf32>
      %55 = arith.addf %53, %54 : vector<8x1xf32>
      %56 = math.rsqrt %55 : vector<8x1xf32>
      %c0_34 = arith.constant 0 : index
      %c0_35 = arith.constant 0 : index
      %57 = vector.load %arg7[%c0_34, %c0_35] : memref<8x1xf32, #tpu.memory_space<vmem>>, vector<8x1xf32>
      tpu.vector_store %arg7[%c0_34, %c0_35], %56 {strides = array<i32>} : memref<8x1xf32, #tpu.memory_space<vmem>>, vector<8x1xf32>,
      %c0_36 = arith.constant 0 : index
      %c0_37 = arith.constant 0 : index
      %58 = vector.load %arg9[%c0_36, %c0_37] : memref<8x1xf32, #tpu.memory_space<vmem>>, vector<8x1xf32>
      %cst_38 = arith.constant 0.000000e+00 : f32
      %59 = vector.broadcast %cst_38 : f32 to vector<8x1xf32>
      %60 = arith.subf %59, %58 : vector<8x1xf32>
      %61 = arith.mulf %60, %56 : vector<8x1xf32>
      %c0_39 = arith.constant 0 : index
      %c0_40 = arith.constant 0 : index
      %62 = vector.load %arg8[%c0_39, %c0_40] : memref<8x1xf32, #tpu.memory_space<vmem>>, vector<8x1xf32>
      tpu.vector_store %arg8[%c0_39, %c0_40], %61 {strides = array<i32>} : memref<8x1xf32, #tpu.memory_space<vmem>>, vector<8x1xf32>,
    } else {
    }
    return
  }
  func.func @transform_0(%arg0: i32, %arg1: i32) -> (i32, i32, i32) {
    %c0_i32 = arith.constant 0 : i32
    %c0_i32_0 = arith.constant 0 : i32
    return %arg0, %c0_i32, %arg1 : i32, i32, i32
  }
  func.func @transform_1(%arg0: i32, %arg1: i32) -> (i32, i32) {
    %c0_i32 = arith.constant 0 : i32
    %c0_i32_0 = arith.constant 0 : i32
    %c0_i32_1 = arith.constant 0 : i32
    return %c0_i32, %c0_i32_0 : i32, i32
  }
  func.func @transform_2(%arg0: i32, %arg1: i32) -> (i32, i32) {
    %c0_i32 = arith.constant 0 : i32
    %c0_i32_0 = arith.constant 0 : i32
    %c0_i32_1 = arith.constant 0 : i32
    return %c0_i32, %c0_i32_0 : i32, i32
  }
  func.func @transform_3(%arg0: i32, %arg1: i32) -> (i32, i32) {
    %c0_i32 = arith.constant 0 : i32
    %c0_i32_0 = arith.constant 0 : i32
    %c0_i32_1 = arith.constant 0 : i32
    return %c0_i32, %c0_i32_0 : i32, i32
  }
  func.func @transform_4(%arg0: i32, %arg1: i32) -> (i32, i32) {
    %c0_i32 = arith.constant 0 : i32
    %c0_i32_0 = arith.constant 0 : i32
    %c0_i32_1 = arith.constant 0 : i32
    return %c0_i32, %c0_i32_0 : i32, i32
  }
  func.func @transform_5(%arg0: i32, %arg1: i32) -> (i32, i32) {
    %c0_i32 = arith.constant 0 : i32
    %c0_i32_0 = arith.constant 0 : i32
    %c0_i32_1 = arith.constant 0 : i32
    return %c0_i32, %c0_i32_0 : i32, i32
  }
  func.func @transform_6(%arg0: i32, %arg1: i32) -> (i32, i32) {
    %c0_i32 = arith.constant 0 : i32
    %c0_i32_0 = arith.constant 0 : i32
    %c0_i32_1 = arith.constant 0 : i32
    return %c0_i32, %c0_i32_0 : i32, i32
  }
}

module attributes {stable_mosaic.version = 11 : i64} {
  func.func @_final_kernel(%arg0: i32, %arg1: i32, %arg2: memref<1x4x256xf32, #tpu.memory_space<vmem>>, %arg3: memref<32x4xf32, #tpu.memory_space<vmem>>, %arg4: memref<32x1xf32, #tpu.memory_space<vmem>>, %arg5: memref<32x1xf32, #tpu.memory_space<vmem>>, %arg6: memref<8x32xf32, #tpu.memory_space<vmem>>, %arg7: memref<8x1xf32, #tpu.memory_space<vmem>>, %arg8: memref<8x1xf32, #tpu.memory_space<vmem>>, %arg9: memref<1x8x256xf32, #tpu.memory_space<vmem>>) attributes {dimension_semantics = [#tpu.dimension_semantics<parallel>, #tpu.dimension_semantics<parallel>], iteration_bounds = array<i64: 2, 1>, scalar_prefetch = 0 : i64, scratch_operands = 0 : i64, tpu.core_type = #tpu.core_type<tc>, window_params = [{transform_indices = @transform_0, window_bounds = array<i64: 1, 4, 256>}, {pipeline_mode = #tpu.pipeline_mode<synchronous>, transform_indices = @transform_1, window_bounds = array<i64: 32, 4>}, {pipeline_mode = #tpu.pipeline_mode<synchronous>, transform_indices = @transform_2, window_bounds = array<i64: 32, 1>}, {pipeline_mode = #tpu.pipeline_mode<synchronous>, transform_indices = @transform_3, window_bounds = array<i64: 32, 1>}, {pipeline_mode = #tpu.pipeline_mode<synchronous>, transform_indices = @transform_4, window_bounds = array<i64: 8, 32>}, {pipeline_mode = #tpu.pipeline_mode<synchronous>, transform_indices = @transform_5, window_bounds = array<i64: 8, 1>}, {pipeline_mode = #tpu.pipeline_mode<synchronous>, transform_indices = @transform_6, window_bounds = array<i64: 8, 1>}, {transform_indices = @transform_7, window_bounds = array<i64: 1, 8, 256>}]} {
    %c0 = arith.constant 0 : index
    %c0_0 = arith.constant 0 : index
    %0 = vector.load %arg3[%c0, %c0_0] : memref<32x4xf32, #tpu.memory_space<vmem>>, vector<32x4xf32>
    %c0_1 = arith.constant 0 : index
    %c0_2 = arith.constant 0 : index
    %c0_3 = arith.constant 0 : index
    %1 = vector.load %arg2[%c0_1, %c0_2, %c0_3] : memref<1x4x256xf32, #tpu.memory_space<vmem>>, vector<1x4x256xf32>
    %2 = vector.shape_cast %1 : vector<1x4x256xf32> to vector<4x256xf32>
    %cst = arith.constant dense<0.000000e+00> : vector<32x256xf32>
    %3 = tpu.matmul %0, %2, %cst {dimension_numbers = #tpu.dot_dimension_numbers<[1], [0], [0], [1], [0, 0, 1, 1], [], []>} : vector<32x4xf32>, vector<4x256xf32>, vector<32x256xf32> -> vector<32x256xf32>
    %c0_4 = arith.constant 0 : index
    %c0_5 = arith.constant 0 : index
    %4 = vector.load %arg4[%c0_4, %c0_5] : memref<32x1xf32, #tpu.memory_space<vmem>>, vector<32x1xf32>
    %5 = vector.broadcast %4 : vector<32x1xf32> to vector<32x256xf32>
    %6 = arith.mulf %3, %5 : vector<32x256xf32>
    %c0_6 = arith.constant 0 : index
    %c0_7 = arith.constant 0 : index
    %7 = vector.load %arg5[%c0_6, %c0_7] : memref<32x1xf32, #tpu.memory_space<vmem>>, vector<32x1xf32>
    %8 = vector.broadcast %7 : vector<32x1xf32> to vector<32x256xf32>
    %9 = arith.addf %6, %8 : vector<32x256xf32>
    %cst_8 = arith.constant 0.000000e+00 : f32
    %10 = vector.broadcast %cst_8 : f32 to vector<32x256xf32>
    %11 = arith.maximumf %9, %10 : vector<32x256xf32>
    %c0_9 = arith.constant 0 : index
    %c0_10 = arith.constant 0 : index
    %12 = vector.load %arg6[%c0_9, %c0_10] : memref<8x32xf32, #tpu.memory_space<vmem>>, vector<8x32xf32>
    %cst_11 = arith.constant dense<0.000000e+00> : vector<8x256xf32>
    %13 = tpu.matmul %12, %11, %cst_11 {dimension_numbers = #tpu.dot_dimension_numbers<[1], [0], [0], [1], [0, 0, 1, 1], [], []>} : vector<8x32xf32>, vector<32x256xf32>, vector<8x256xf32> -> vector<8x256xf32>
    %c0_12 = arith.constant 0 : index
    %c0_13 = arith.constant 0 : index
    %14 = vector.load %arg7[%c0_12, %c0_13] : memref<8x1xf32, #tpu.memory_space<vmem>>, vector<8x1xf32>
    %15 = vector.broadcast %14 : vector<8x1xf32> to vector<8x256xf32>
    %16 = arith.mulf %13, %15 : vector<8x256xf32>
    %c0_14 = arith.constant 0 : index
    %c0_15 = arith.constant 0 : index
    %17 = vector.load %arg8[%c0_14, %c0_15] : memref<8x1xf32, #tpu.memory_space<vmem>>, vector<8x1xf32>
    %18 = vector.broadcast %17 : vector<8x1xf32> to vector<8x256xf32>
    %19 = arith.addf %16, %18 : vector<8x256xf32>
    %cst_16 = arith.constant 0.000000e+00 : f32
    %20 = vector.broadcast %cst_16 : f32 to vector<8x256xf32>
    %21 = arith.maximumf %19, %20 : vector<8x256xf32>
    %c0_17 = arith.constant 0 : index
    %c0_18 = arith.constant 0 : index
    %c0_19 = arith.constant 0 : index
    %22 = vector.load %arg9[%c0_17, %c0_18, %c0_19] : memref<1x8x256xf32, #tpu.memory_space<vmem>>, vector<1x8x256xf32>
    %23 = vector.shape_cast %22 : vector<1x8x256xf32> to vector<8x256xf32>
    %24 = vector.shape_cast %21 : vector<8x256xf32> to vector<1x8x256xf32>
    tpu.vector_store %arg9[%c0_17, %c0_18, %c0_19], %24 {strides = array<i32>} : memref<1x8x256xf32, #tpu.memory_space<vmem>>, vector<1x8x256xf32>,
    return
  }
  func.func @transform_0(%arg0: i32, %arg1: i32) -> (i32, i32, i32) {
    %c0_i32 = arith.constant 0 : i32
    %c0_i32_0 = arith.constant 0 : i32
    return %arg0, %c0_i32, %arg1 : i32, i32, i32
  }
  func.func @transform_1(%arg0: i32, %arg1: i32) -> (i32, i32) {
    %c0_i32 = arith.constant 0 : i32
    %c0_i32_0 = arith.constant 0 : i32
    %c0_i32_1 = arith.constant 0 : i32
    return %c0_i32, %c0_i32_0 : i32, i32
  }
  func.func @transform_2(%arg0: i32, %arg1: i32) -> (i32, i32) {
    %c0_i32 = arith.constant 0 : i32
    %c0_i32_0 = arith.constant 0 : i32
    %c0_i32_1 = arith.constant 0 : i32
    return %c0_i32, %c0_i32_0 : i32, i32
  }
  func.func @transform_3(%arg0: i32, %arg1: i32) -> (i32, i32) {
    %c0_i32 = arith.constant 0 : i32
    %c0_i32_0 = arith.constant 0 : i32
    %c0_i32_1 = arith.constant 0 : i32
    return %c0_i32, %c0_i32_0 : i32, i32
  }
  func.func @transform_4(%arg0: i32, %arg1: i32) -> (i32, i32) {
    %c0_i32 = arith.constant 0 : i32
    %c0_i32_0 = arith.constant 0 : i32
    %c0_i32_1 = arith.constant 0 : i32
    return %c0_i32, %c0_i32_0 : i32, i32
  }
  func.func @transform_5(%arg0: i32, %arg1: i32) -> (i32, i32) {
    %c0_i32 = arith.constant 0 : i32
    %c0_i32_0 = arith.constant 0 : i32
    %c0_i32_1 = arith.constant 0 : i32
    return %c0_i32, %c0_i32_0 : i32, i32
  }
  func.func @transform_6(%arg0: i32, %arg1: i32) -> (i32, i32) {
    %c0_i32 = arith.constant 0 : i32
    %c0_i32_0 = arith.constant 0 : i32
    %c0_i32_1 = arith.constant 0 : i32
    return %c0_i32, %c0_i32_0 : i32, i32
  }
  func.func @transform_7(%arg0: i32, %arg1: i32) -> (i32, i32, i32) {
    %c0_i32 = arith.constant 0 : i32
    %c0_i32_0 = arith.constant 0 : i32
    return %arg0, %c0_i32, %arg1 : i32, i32, i32
  }
}

</mosaic_0001>

<llo_original>
// kernel: mlp_pallas.4
$region0: #{mlp_pallas.4}
  #allocation0 [shape = 'u32[]', space=smem, size = 0x4, offset = 0x4, fixed_abs, tag = 'smem constant byte address 0x4 - core index']
  #allocation1 [shape = 'u32[144,128]{1,0:T(1,128)}', space=vmem, size = 0x12000, scoped, tag = 'internal scratch']
  #allocation2 [shape = 'f32[8,1]{1,0:T(8,128)}', space=vmem, size = 0x1000, scoped, tag = 'scratch operand']
  #allocation3 [shape = 'f32[8,1]{1,0:T(8,128)}', space=vmem, size = 0x1000, scoped, tag = 'scratch operand']
  %s0 = inlined_call_operand.vmem [shape: f32[2,4,256], index: 0, kind: input, shape index: {}]
  %s1 = inlined_call_operand.vmem [shape: f32[32,4], index: 1, kind: input, shape index: {}]
  %s2 = inlined_call_operand.vmem [shape: f32[32,1], index: 2, kind: input, shape index: {}]
  %s3 = inlined_call_operand.vmem [shape: f32[32,1], index: 3, kind: input, shape index: {}]
  %s4 = inlined_call_operand.vmem [shape: f32[8,32], index: 4, kind: input, shape index: {}]
  %s5 = inlined_call_operand.vmem [shape: f32[8,1], index: 5, kind: output, shape index: {0}]
  %s6 = inlined_call_operand.vmem [shape: f32[8,1], index: 6, kind: output, shape index: {1}]
  %7 = xla_tuple %s5, %s6
  %s8 = sld [smem:[#allocation0]]
  $region69: #{mlp_pallas.4} parent=0
    _
  %s10 = ssub.s32 1, %s8
  %s11 = scalar_select 0, %s10, %s8
  loop: start=0, step=1, limit=4
  $region2: #{mlp_pallas.4} parent=0 // loop_pre_header
    _
  $region3: #{mlp_pallas.4} parent=0 // loop_header
    %s13 = sphi 0, %s17
    %p14 = scmp.ge.s32.totalorder %s13, 4
    %s20 = sphi 0, %s32
    %s21 = sphi 0, %s28
    %s22 = sphi 0, %s20
    %s23 = sphi 0, %s21
    %s24 = sphi 0, %s22
    %s25 = sphi 0, %s23
    %s37 = sphi 0, %s39
    %s40 = sphi 0, %s37
    %s41 = sphi 0, %s40
    %s57 = sphi 0, %s41
    %s61 = sphi 0, %s61
    %s63 = sphi 0, %s61
    %s64 = sphi 0, %s63
    %s78 = sphi 0, %s64
    %s82 = sphi 0, %s82
    %s84 = sphi 0, %s82
    %s85 = sphi 0, %s84
    %s99 = sphi 0, %s85
    %s103 = sphi 0, %s103
    %s105 = sphi 0, %s103
    %s106 = sphi 0, %s105
    %s120 = sphi 0, %s106
    %s124 = sphi 0, %s124
    %s126 = sphi 0, %s124
    %s127 = sphi 0, %s126
    %s141 = sphi 0, %s127
    %s145 = sphi 0, %s145
    %s147 = sphi 0, %s145
    %s148 = sphi 0, %s147
    %s162 = sphi 0, %s148
    %s166 = sphi 0, %s166
    %s168 = sphi 0, %s166
    %s169 = sphi 0, %s168
    %s183 = sphi 0, %s169
  $region4: #{mlp_pallas.4} parent=0 // loop_header_branch
    %16 = sbr.rel (%p14) target = $region8
  $region5: #{mlp_pallas.4} parent=0 // loop_body
    %s18 = ssub.s32 %s13, 1
    %s19 = ssub.s32 %s13, 2
    %s26 = sadd.s32 1, %s21
    %p27 = scmp.ge.s32.totalorder %s26, 1
    %s28 = scalar_select %p27, 0, %s26
    %s29 = sadd.s32 1, %s20
    %s30 = scalar_select %p27, %s29, %s20
    %p31 = scmp.ge.s32.totalorder %s30, 2
    %s32 = scalar_select %p31, 0, %s30
    %s33 = ssub.s32 %s20, %s32
    %s34 = ssub.s32 %s21, %s28
    %s35 = sor.u32 %s33, %s34
    %p36 = scmp.eq.s32.totalorder %s35, 0
    %s38 = sadd.s32 %s37, 1
    %s39 = scalar_select %p36, %s37, %s38
    %p42 = pneg %p36
    %p43 = scmp.eq.s32.totalorder %s13, 1
    %p44 = por %p42, %p43
    %p45 = scmp.ne.s32.totalorder %s37, %s40
    %p46 = scmp.eq.s32.totalorder %s13, 0
    %p47 = por %p45, %p46
    %p48 = scmp.ne.s32.totalorder %s37, %s40
    %p49 = scmp.eq.s32.totalorder %s18, 1
    %p50 = por %p48, %p49
    %p51 = scmp.ne.s32.totalorder %s40, %s41
    %p52 = scmp.eq.s32.totalorder %s18, 0
    %p53 = por %p51, %p52
    %p54 = scmp.ne.s32.totalorder %s40, %s41
    %p55 = scmp.eq.s32.totalorder %s19, 1
    %p56 = por %p54, %p55
    %p58 = scmp.ne.s32.totalorder %s41, %s57
    %p59 = scmp.eq.s32.totalorder %s19, 0
    %p60 = por %p58, %p59
    %s62 = sadd.s32 %s61, 1
    %p65 = scmp.eq.s32.totalorder %s13, 1
    %p66 = scmp.ne.s32.totalorder %s61, %s63
    %p67 = scmp.eq.s32.totalorder %s13, 0
    %p68 = por %p66, %p67
    %p69 = scmp.ne.s32.totalorder %s61, %s63
    %p70 = scmp.eq.s32.totalorder %s18, 1
    %p71 = por %p69, %p70
    %p72 = scmp.ne.s32.totalorder %s63, %s64
    %p73 = scmp.eq.s32.totalorder %s18, 0
    %p74 = por %p72, %p73
    %p75 = scmp.ne.s32.totalorder %s63, %s64
    %p76 = scmp.eq.s32.totalorder %s19, 1
    %p77 = por %p75, %p76
    %p79 = scmp.ne.s32.totalorder %s64, %s78
    %p80 = scmp.eq.s32.totalorder %s19, 0
    %p81 = por %p79, %p80
    %s83 = sadd.s32 %s82, 1
    %p86 = scmp.eq.s32.totalorder %s13, 1
    %p87 = scmp.ne.s32.totalorder %s82, %s84
    %p88 = scmp.eq.s32.totalorder %s13, 0
    %p89 = por %p87, %p88
    %p90 = scmp.ne.s32.totalorder %s82, %s84
    %p91 = scmp.eq.s32.totalorder %s18, 1
    %p92 = por %p90, %p91
    %p93 = scmp.ne.s32.totalorder %s84, %s85
    %p94 = scmp.eq.s32.totalorder %s18, 0
    %p95 = por %p93, %p94
    %p96 = scmp.ne.s32.totalorder %s84, %s85
    %p97 = scmp.eq.s32.totalorder %s19, 1
    %p98 = por %p96, %p97
    %p100 = scmp.ne.s32.totalorder %s85, %s99
    %p101 = scmp.eq.s32.totalorder %s19, 0
    %p102 = por %p100, %p101
    %s104 = sadd.s32 %s103, 1
    %p107 = scmp.eq.s32.totalorder %s13, 1
    %p108 = scmp.ne.s32.totalorder %s103, %s105
    %p109 = scmp.eq.s32.totalorder %s13, 0
    %p110 = por %p108, %p109
    %p111 = scmp.ne.s32.totalorder %s103, %s105
    %p112 = scmp.eq.s32.totalorder %s18, 1
    %p113 = por %p111, %p112
    %p114 = scmp.ne.s32.totalorder %s105, %s106
    %p115 = scmp.eq.s32.totalorder %s18, 0
    %p116 = por %p114, %p115
    %p117 = scmp.ne.s32.totalorder %s105, %s106
    %p118 = scmp.eq.s32.totalorder %s19, 1
    %p119 = por %p117, %p118
    %p121 = scmp.ne.s32.totalorder %s106, %s120
    %p122 = scmp.eq.s32.totalorder %s19, 0
    %p123 = por %p121, %p122
    %s125 = sadd.s32 %s124, 1
    %p128 = scmp.eq.s32.totalorder %s13, 1
    %p129 = scmp.ne.s32.totalorder %s124, %s126
    %p130 = scmp.eq.s32.totalorder %s13, 0
    %p131 = por %p129, %p130
    %p132 = scmp.ne.s32.totalorder %s124, %s126
    %p133 = scmp.eq.s32.totalorder %s18, 1
    %p134 = por %p132, %p133
    %p135 = scmp.ne.s32.totalorder %s126, %s127
    %p136 = scmp.eq.s32.totalorder %s18, 0
    %p137 = por %p135, %p136
    %p138 = scmp.ne.s32.totalorder %s126, %s127
    %p139 = scmp.eq.s32.totalorder %s19, 1
    %p140 = por %p138, %p139
    %p142 = scmp.ne.s32.totalorder %s127, %s141
    %p143 = scmp.eq.s32.totalorder %s19, 0
    %p144 = por %p142, %p143
    %s146 = sadd.s32 %s145, 1
    %p149 = scmp.eq.s32.totalorder %s13, 1
    %p150 = scmp.ne.s32.totalorder %s145, %s147
    %p151 = scmp.eq.s32.totalorder %s13, 0
    %p152 = por %p150, %p151
    %p153 = scmp.ne.s32.totalorder %s145, %s147
    %p154 = scmp.eq.s32.totalorder %s18, 1
    %p155 = por %p153, %p154
    %p156 = scmp.ne.s32.totalorder %s147, %s148
    %p157 = scmp.eq.s32.totalorder %s18, 0
    %p158 = por %p156, %p157
    %p159 = scmp.ne.s32.totalorder %s147, %s148
    %p160 = scmp.eq.s32.totalorder %s19, 1
    %p161 = por %p159, %p160
    %p163 = scmp.ne.s32.totalorder %s148, %s162
    %p164 = scmp.eq.s32.totalorder %s19, 0
    %p165 = por %p163, %p164
    %s167 = sadd.s32 %s166, 1
    %p170 = scmp.eq.s32.totalorder %s13, 1
    %p171 = scmp.ne.s32.totalorder %s166, %s168
    %p172 = scmp.eq.s32.totalorder %s13, 0
    %p173 = por %p171, %p172
    %p174 = scmp.ne.s32.totalorder %s166, %s168
    %p175 = scmp.eq.s32.totalorder %s18, 1
    %p176 = por %p174, %p175
    %p177 = scmp.ne.s32.totalorder %s168, %s169
    %p178 = scmp.eq.s32.totalorder %s18, 0
    %p179 = por %p177, %p178
    %p180 = scmp.ne.s32.totalorder %s168, %s169
    %p181 = scmp.eq.s32.totalorder %s19, 1
    %p182 = por %p180, %p181
    %p184 = scmp.ne.s32.totalorder %s169, %s183
    %p185 = scmp.eq.s32.totalorder %s19, 0
    %p186 = por %p184, %p185
    %p187 = scmp.le.s32.totalorder 1, %s13
    %p188 = scmp.lt.s32.totalorder %s13, 3
    %p189 = pnand %p187, %p188
    %p190 = pneg %p189
    // Predicated region
    $region9: #{mlp_pallas.4} parent=5 // pred_check
      _
    $region10: #{mlp_pallas.4} parent=5 // pred_check_branch
      %192 = sbr.rel (%p189) target = $region12
    $region11: #{mlp_pallas.4} parent=5 // pred_region
      %s193 = ssub.s32 %s13, 1
      // Predicated region
      $region13: #{mlp_pallas.4} parent=11 // pred_check
        %p194 = pneg %p74
      $region14: #{mlp_pallas.4} parent=11 // pred_check_branch
        %196 = sbr.rel (%p194) target = $region16
      $region15: #{mlp_pallas.4} parent=11 // pred_region
        _
      $region16: #{mlp_pallas.4} parent=11 // pred_fallthru
        _
      // Predicated region
      $region17: #{mlp_pallas.4} parent=11 // pred_check
        %p197 = pneg %p95
      $region18: #{mlp_pallas.4} parent=11 // pred_check_branch
        %199 = sbr.rel (%p197) target = $region20
      $region19: #{mlp_pallas.4} parent=11 // pred_region
        _
      $region20: #{mlp_pallas.4} parent=11 // pred_fallthru
        _
      // Predicated region
      $region21: #{mlp_pallas.4} parent=11 // pred_check
        %p200 = pneg %p116
      $region22: #{mlp_pallas.4} parent=11 // pred_check_branch
        %202 = sbr.rel (%p200) target = $region24
      $region23: #{mlp_pallas.4} parent=11 // pred_region
        _
      $region24: #{mlp_pallas.4} parent=11 // pred_fallthru
        _
      // Predicated region
      $region25: #{mlp_pallas.4} parent=11 // pred_check
        %p203 = pneg %p137
      $region26: #{mlp_pallas.4} parent=11 // pred_check_branch
        %205 = sbr.rel (%p203) target = $region28
      $region27: #{mlp_pallas.4} parent=11 // pred_region
        _
      $region28: #{mlp_pallas.4} parent=11 // pred_fallthru
        _
    $region12: #{mlp_pallas.4} parent=5 // pred_fallthru
      _
    %p206 = scmp.lt.s32.totalorder %s13, 2
    // Predicated region
    $region29: #{mlp_pallas.4} parent=5 // pred_check
      %p207 = pneg %p206
    $region30: #{mlp_pallas.4} parent=5 // pred_check_branch
      %209 = sbr.rel (%p207) target = $region32
    $region31: #{mlp_pallas.4} parent=5 // pred_region
      // Predicated region
      $region33: #{mlp_pallas.4} parent=31 // pred_check
        %p210 = pneg %p47
      $region34: #{mlp_pallas.4} parent=31 // pred_check_branch
        %212 = sbr.rel (%p210) target = $region36
      $region35: #{mlp_pallas.4} parent=31 // pred_region
        %s213 = smul.u32 2, %s21
        %p214 = scmp.lt.s32.totalorder %s20, 1
        %s215 = scalar_select %p214, %s20, 1
        %p216 = scmp.lt.s32.totalorder %s213, 1
        %s217 = scalar_select %p216, %s213, 1
        %s218 = smul.addr %s215, 2
        %s219 = sadd.s32 %s217, %s218
        %s220 = smul.addr %s219, 4
        %s221 = scalar_lea.vmem %s0, %s220
        %s222 = smul.u32 2, %s21
      $region36: #{mlp_pallas.4} parent=31 // pred_fallthru
        _
    $region32: #{mlp_pallas.4} parent=5 // pred_fallthru
      _
    %p223 = scmp.le.s32.totalorder 1, %s13
    %p224 = scmp.lt.s32.totalorder %s13, 3
    %p225 = pnand %p223, %p224
    %p226 = pneg %p225
    // Predicated region
    $region37: #{mlp_pallas.4} parent=5 // pred_check
      _
    $region38: #{mlp_pallas.4} parent=5 // pred_check_branch
      %228 = sbr.rel (%p225) target = $region40
    $region39: #{mlp_pallas.4} parent=5 // pred_region
      %s229 = ssub.s32 %s13, 1
      %s230 = smul.u32 2, %s23
      %p231 = scmp.lt.s32.totalorder %s22, 1
      %s232 = scalar_select %p231, %s22, 1
      %p233 = scmp.lt.s32.totalorder %s230, 1
      %s234 = scalar_select %p233, %s230, 1
      %s235 = smul.addr %s232, 2
      %s236 = sadd.s32 %s234, %s235
      %s237 = smul.addr %s236, 4
      %s238 = scalar_lea.vmem %s0, %s237
      %p239 = pneg %p53
      %p240 = pneg %p50
      %p241 = pneg %p74
      %p242 = pneg %p71
      %p243 = pneg %p95
      %p244 = pneg %p92
      %p245 = pneg %p116
      %p246 = pneg %p113
      %p247 = pneg %p137
      %p248 = pneg %p134
      %p249 = pneg %p158
      %p250 = pneg %p155
      %p251 = pneg %p179
      %p252 = pneg %p176
      %s253 = smul.u32 2, %s23
      %p254 = scmp.lt.s32.totalorder %s22, 1
      %s255 = scalar_select %p254, %s22, 1
      %p256 = scmp.lt.s32.totalorder %s253, 1
      %s257 = scalar_select %p256, %s253, 1
      %s258 = smul.addr %s255, 2
      %s259 = sadd.s32 %s257, %s258
      %s260 = smul.addr %s259, 4
      %s261 = scalar_lea.vmem %s0, %s260
      %s262 = smul.u32 2, %s23
      %s263 = sadd.s32 %s22, %s23
      %p264 = scmp.eq.s32.totalorder %s263, 0
      // Predicated region
      $region41: #{mlp_pallas.4} parent=39 // pred_check
        %p265 = pneg %p264
      $region42: #{mlp_pallas.4} parent=39 // pred_check_branch
        %267 = sbr.rel (%p265) target = $region44
      $region43: #{mlp_pallas.4} parent=39 // pred_region
        %vm268 = vcmask 7168
        %269 = vst.msk [vmem:[#allocation2] sm:$0xff] %vm268, 0.0
        %270 = vst.msk [vmem:[#allocation3] sm:$0xff] %vm268, 0.0
      $region44: #{mlp_pallas.4} parent=39 // pred_fallthru
        _
      %v271 = vld [vmem:[%s1] sm:$0xff]
      %v272 = vld [vmem:[%s1 + $0x8] sm:$0xff]
      %v273 = vld [vmem:[%s1 + $0x10] sm:$0xff]
      %v274 = vld [vmem:[%s1 + $0x18] sm:$0xff]
      %v275 = vld [vmem:[%s261] sm:$0xff]
      %v277 = vcombine.high %v275, %v275
      %vm278 = vcmask 31744
      %v280 = vsel %vm278, %v271, 0
      %v283 = vsel %vm278, %v272, 0
      %v286 = vsel %vm278, %v273, 0
      %v289 = vsel %vm278, %v274, 0
      %vm291 = vcmask 1043456
      %v292 = vsel %vm291, %v275, 0
      %v294 = vsel %vm291, %v277, 0
      %296 = vmatprep.subr.mxu0 0.0
      %297 = vmatpush1.msra.mxu0 0.0
      %298 = vmatprep.subr.mxu0 0.0
      %299 = vmatpush1.msra.mxu0 0.0
      %300 = vmatprep.subr.mxu0 0.0
      %301 = vmatpush1.msra.mxu0 0.0
      %302 = vmatprep.subr.mxu0 0.0
      %303 = vmatpush1.msra.mxu0 0.0
      %304 = vmatprep.subr.mxu0 0.0
      %305 = vmatpush1.msra.mxu0 0.0
      %306 = vmatprep.subr.mxu0 0.0
      %307 = vmatpush1.msra.mxu0 0.0
      %308 = vmatprep.subr.mxu0 0.0
      %309 = vmatpush1.msra.mxu0 0.0
      %310 = vmatprep.subr.mxu0 0.0
      %311 = vmatpush1.msra.mxu0 0.0
      %312 = vmatprep.subr.mxu0 0.0
      %313 = vmatpush1.msra.mxu0 0.0
      %314 = vmatprep.subr.mxu0 0.0
      %315 = vmatpush1.msra.mxu0 0.0
      %316 = vmatprep.subr.mxu0 0.0
      %317 = vmatpush1.msra.mxu0 0.0
      %318 = vmatprep.subr.mxu0 0.0
      %319 = vmatpush1.msra.mxu0 0.0
      %320 = vmatprep.subr.mxu0 0.0
      %321 = vmatpush1.msra.mxu0 0.0
      %322 = vmatprep.subr.mxu0 0.0
      %323 = vmatpush1.msra.mxu0 0.0
      %324 = vmatprep.subr.mxu0 0.0
      %325 = vmatpush1.msra.mxu0 0.0
      %326 = vmatprep.subr.mxu0 %v294
      %327 = vmatpush1.msra.mxu0 %v292
      %328 = vmatprep.subr.mxu0 0.0
      %329 = vmatpush2.msra.mxu0 0.0
      %330 = vmatprep.subr.mxu0 0.0
      %331 = vmatpush2.msra.mxu0 0.0
      %332 = vmatprep.subr.mxu0 0.0
      %333 = vmatpush2.msra.mxu0 0.0
      %334 = vmatprep.subr.mxu0 0.0
      %335 = vmatpush2.msra.mxu0 0.0
      %336 = vmatprep.subr.mxu0 0.0
      %337 = vmatpush2.msra.mxu0 0.0
      %338 = vmatprep.subr.mxu0 0.0
      %339 = vmatpush2.msra.mxu0 0.0
      %340 = vmatprep.subr.mxu0 0.0
      %341 = vmatpush2.msra.mxu0 0.0
      %342 = vmatprep.subr.mxu0 0.0
      %343 = vmatpush2.msra.mxu0 0.0
      %344 = vmatprep.subr.mxu0 0.0
      %345 = vmatpush2.msra.mxu0 0.0
      %346 = vmatprep.subr.mxu0 0.0
      %347 = vmatpush2.msra.mxu0 0.0
      %348 = vmatprep.subr.mxu0 0.0
      %349 = vmatpush2.msra.mxu0 0.0
      %350 = vmatprep.subr.mxu0 0.0
      %351 = vmatpush2.msra.mxu0 0.0
      %352 = vmatprep.subr.mxu0 0.0
      %353 = vmatpush2.msra.mxu0 0.0
      %354 = vmatprep.subr.mxu0 0.0
      %355 = vmatpush2.msra.mxu0 0.0
      %356 = vmatprep.subr.mxu0 0.0
      %357 = vmatpush2.msra.mxu0 0.0
      %358 = vmatprep.subr.mxu0 0.0
      %359 = vmatpush2.msra.mxu0 0.0
      %360 = vmatprep.mubr.f32.mxu0 0.0
      %361 = vmatmul.mubr.f32.gmra.mxu0 %v280
      %v362 = vpop.f32.mrf.mxu0
      %v363 = vadd.f32 0.0, %v362
      %v364 = vpop.f32.mrf.mxu0
      %v365 = vadd.f32 0.0, %v364
      %366 = vmatprep.mubr.f32.mxu0 0.0
      %367 = vmatmul.mubr.f32.gmra.mxu0 %v283
      %v368 = vpop.f32.mrf.mxu0
      %v369 = vadd.f32 0.0, %v368
      %v370 = vpop.f32.mrf.mxu0
      %v371 = vadd.f32 0.0, %v370
      %372 = vmatprep.mubr.f32.mxu0 0.0
      %373 = vmatmul.mubr.f32.gmra.mxu0 %v286
      %v374 = vpop.f32.mrf.mxu0
      %v375 = vadd.f32 0.0, %v374
      %v376 = vpop.f32.mrf.mxu0
      %v377 = vadd.f32 0.0, %v376
      %378 = vmatprep.mubr.f32.mxu0 0.0
      %379 = vmatmul.mubr.f32.gmra.mxu0 %v289
      %v380 = vpop.f32.mrf.mxu0
      %v381 = vadd.f32 0.0, %v380
      %v382 = vpop.f32.mrf.mxu0
      %v383 = vadd.f32 0.0, %v382
      %384 = vdwg.mxu0
      %v385 = vld [vmem:[%s2] sm:$0xff]
      %v386 = vld [vmem:[%s2 + $0x8] sm:$0xff]
      %v387 = vld [vmem:[%s2 + $0x10] sm:$0xff]
      %v388 = vld [vmem:[%s2 + $0x18] sm:$0xff]
      %390 = vset.pattern.permute.xlu0 0
      %391 = vperm.xlu0 %390, %v385
      %v392 = vpop.permute.xlu0 %391
      %395 = vset.pattern.permute.xlu0 0
      %396 = vperm.xlu0 %395, %v386
      %v397 = vpop.permute.xlu0 %396
      %400 = vset.pattern.permute.xlu0 0
      %401 = vperm.xlu0 %400, %v387
      %v402 = vpop.permute.xlu0 %401
      %405 = vset.pattern.permute.xlu0 0
      %406 = vperm.xlu0 %405, %v388
      %v407 = vpop.permute.xlu0 %406
      %v409 = vmul.f32 %v363, %v392
      %v410 = vmul.f32 %v365, %v392
      %v411 = vmul.f32 %v369, %v397
      %v412 = vmul.f32 %v371, %v397
      %v413 = vmul.f32 %v375, %v402
      %v414 = vmul.f32 %v377, %v402
      %v415 = vmul.f32 %v381, %v407
      %v416 = vmul.f32 %v383, %v407
      %v417 = vld [vmem:[%s3] sm:$0xff]
      %v418 = vld [vmem:[%s3 + $0x8] sm:$0xff]
      %v419 = vld [vmem:[%s3 + $0x10] sm:$0xff]
      %v420 = vld [vmem:[%s3 + $0x18] sm:$0xff]
      %422 = vset.pattern.permute.xlu0 0
      %423 = vperm.xlu0 %422, %v417
      %v424 = vpop.permute.xlu0 %423
      %427 = vset.pattern.permute.xlu0 0
      %428 = vperm.xlu0 %427, %v418
      %v429 = vpop.permute.xlu0 %428
      %432 = vset.pattern.permute.xlu0 0
      %433 = vperm.xlu0 %432, %v419
      %v434 = vpop.permute.xlu0 %433
      %437 = vset.pattern.permute.xlu0 0
      %438 = vperm.xlu0 %437, %v420
      %v439 = vpop.permute.xlu0 %438
      %v441 = vadd.f32 %v409, %v424
      %v442 = vadd.f32 %v410, %v424
      %v443 = vadd.f32 %v411, %v429
      %v444 = vadd.f32 %v412, %v429
      %v445 = vadd.f32 %v413, %v434
      %v446 = vadd.f32 %v414, %v434
      %v447 = vadd.f32 %v415, %v439
      %v448 = vadd.f32 %v416, %v439
      %v449 = vmax.f32 %v441, 0.0
      %v450 = vmax.f32 %v442, 0.0
      %v451 = vmax.f32 %v443, 0.0
      %v452 = vmax.f32 %v444, 0.0
      %v453 = vmax.f32 %v445, 0.0
      %v454 = vmax.f32 %v446, 0.0
      %v455 = vmax.f32 %v447, 0.0
      %v456 = vmax.f32 %v448, 0.0
      %v457 = vld [vmem:[%s4] sm:$0xff]
      %vm458 = vcmask 261120
      %v460 = vsel %vm458, %v457, 0
      %462 = vmatprep.subr.mxu0 0.0
      %463 = vmatpush1.msra.mxu0 0.0
      %464 = vmatprep.subr.mxu0 0.0
      %465 = vmatpush1.msra.mxu0 0.0
      %466 = vmatprep.subr.mxu0 0.0
      %467 = vmatpush1.msra.mxu0 0.0
      %468 = vmatprep.subr.mxu0 0.0
      %469 = vmatpush1.msra.mxu0 0.0
      %470 = vmatprep.subr.mxu0 0.0
      %471 = vmatpush1.msra.mxu0 0.0
      %472 = vmatprep.subr.mxu0 0.0
      %473 = vmatpush1.msra.mxu0 0.0
      %474 = vmatprep.subr.mxu0 0.0
      %475 = vmatpush1.msra.mxu0 0.0
      %476 = vmatprep.subr.mxu0 0.0
      %477 = vmatpush1.msra.mxu0 0.0
      %478 = vmatprep.subr.mxu0 0.0
      %479 = vmatpush1.msra.mxu0 0.0
      %480 = vmatprep.subr.mxu0 0.0
      %481 = vmatpush1.msra.mxu0 0.0
      %482 = vmatprep.subr.mxu0 0.0
      %483 = vmatpush1.msra.mxu0 0.0
      %484 = vmatprep.subr.mxu0 0.0
      %485 = vmatpush1.msra.mxu0 0.0
      %486 = vmatprep.subr.mxu0 %v456
      %487 = vmatpush1.msra.mxu0 %v455
      %488 = vmatprep.subr.mxu0 %v454
      %489 = vmatpush1.msra.mxu0 %v453
      %490 = vmatprep.subr.mxu0 %v452
      %491 = vmatpush1.msra.mxu0 %v451
      %492 = vmatprep.subr.mxu0 %v450
      %493 = vmatpush1.msra.mxu0 %v449
      %494 = vmatprep.subr.mxu0 0.0
      %495 = vmatpush2.msra.mxu0 0.0
      %496 = vmatprep.subr.mxu0 0.0
      %497 = vmatpush2.msra.mxu0 0.0
      %498 = vmatprep.subr.mxu0 0.0
      %499 = vmatpush2.msra.mxu0 0.0
      %500 = vmatprep.subr.mxu0 0.0
      %501 = vmatpush2.msra.mxu0 0.0
      %502 = vmatprep.subr.mxu0 0.0
      %503 = vmatpush2.msra.mxu0 0.0
      %504 = vmatprep.subr.mxu0 0.0
      %505 = vmatpush2.msra.mxu0 0.0
      %506 = vmatprep.subr.mxu0 0.0
      %507 = vmatpush2.msra.mxu0 0.0
      %508 = vmatprep.subr.mxu0 0.0
      %509 = vmatpush2.msra.mxu0 0.0
      %510 = vmatprep.subr.mxu0 0.0
      %511 = vmatpush2.msra.mxu0 0.0
      %512 = vmatprep.subr.mxu0 0.0
      %513 = vmatpush2.msra.mxu0 0.0
      %514 = vmatprep.subr.mxu0 0.0
      %515 = vmatpush2.msra.mxu0 0.0
      %516 = vmatprep.subr.mxu0 0.0
      %517 = vmatpush2.msra.mxu0 0.0
      %518 = vmatprep.subr.mxu0 0.0
      %519 = vmatpush2.msra.mxu0 0.0
      %520 = vmatprep.subr.mxu0 0.0
      %521 = vmatpush2.msra.mxu0 0.0
      %522 = vmatprep.subr.mxu0 0.0
      %523 = vmatpush2.msra.mxu0 0.0
      %524 = vmatprep.subr.mxu0 0.0
      %525 = vmatpush2.msra.mxu0 0.0
      %526 = vmatprep.mubr.f32.mxu0 0.0
      %527 = vmatmul.mubr.f32.gmra.mxu0 %v460
      %v528 = vpop.f32.mrf.mxu0
      %v529 = vadd.f32 0.0, %v528
      %v530 = vpop.f32.mrf.mxu0
      %v531 = vadd.f32 0.0, %v530
      %532 = vdwg.mxu0
      %v533 = vadd.f32 %v529, %v531
      %534 = vadd.xlane.f32.xlu0 %v533
      %v535 = vpop.xlane.xlu0 %534
      %v536 = vrcp.pop 256.0
      %v537 = vmul.f32 %v535, %v536
      %v538 = vsub.f32 %v529, %v537
      %v539 = vsub.f32 %v531, %v537
      %v540 = vmul.f32 %v538, %v538
      %v541 = vmul.f32 %v539, %v539
      %v542 = vadd.f32 %v540, %v541
      %543 = vadd.xlane.f32.xlu0 %v542
      %v544 = vpop.xlane.xlu0 %543
      %s545 = smul.u32 %s263, 256
      %s546 = scvt.s32.f32 %s545
      %s547 = sadd.f32 %s546, 256.0
      %v548 = vld [vmem:[#allocation2] sm:$0xff]
      %v549 = vsub.f32 %v537, %v548
      %v550 = vstv %s547
      %v551 = vrcp.pop %v550
      %s552 = vtos %v551
      %s553 = smul.f32 256.0, %s552
      %v554 = vstv %s553
      %v555 = vmul.f32 %v549, %v554
      %v556 = vadd.f32 %v548, %v555
      %vm557 = vcmask 7168
      %558 = vst.msk [vmem:[#allocation2] sm:$0xff] %vm557, %v556
      %v559 = vld [vmem:[#allocation3] sm:$0xff]
      %v560 = vadd.f32 %v559, %v544
      %v561 = vmul.f32 %v549, %v549
      %s562 = smul.f32 %s546, 256.0
      %v563 = vstv %s547
      %v564 = vrcp.pop %v563
      %s565 = vtos %v564
      %s566 = smul.f32 %s562, %s565
      %v567 = vstv %s566
      %v568 = vmul.f32 %v561, %v567
      %v569 = vadd.f32 %v560, %v568
      %570 = vst.msk [vmem:[#allocation3] sm:$0xff] %vm557, %v569
      %p571 = scmp.eq.s32.totalorder %s263, 1
      // Predicated region
      $region45: #{mlp_pallas.4} parent=39 // pred_check
        %p572 = pneg %p571
      $region46: #{mlp_pallas.4} parent=39 // pred_check_branch
        %574 = sbr.rel (%p572) target = $region48
      $region47: #{mlp_pallas.4} parent=39 // pred_region
        %v575 = vld [vmem:[#allocation3] sm:$0xff]
        %v576 = vstv %s547
        %v577 = vrcp.pop %v576
        %v578 = vmul.f32 %v575, %v577
        %v579 = vadd.f32 %v578, 1e-05
        %v580 = vrsqrt.pop %v579
        %581 = vst.msk [vmem:[%s5] sm:$0xff] %vm557, %v580
        %v582 = vld [vmem:[#allocation2] sm:$0xff]
        %v583 = vsub.f32 0.0, %v582
        %v584 = vmul.f32 %v583, %v580
        %585 = vst.msk [vmem:[%s6] sm:$0xff] %vm557, %v584
      $region48: #{mlp_pallas.4} parent=39 // pred_fallthru
        _
      // Predicated region
      $region49: #{mlp_pallas.4} parent=39 // pred_check
        %p586 = pneg %p155
      $region50: #{mlp_pallas.4} parent=39 // pred_check_branch
        %588 = sbr.rel (%p586) target = $region52
      $region51: #{mlp_pallas.4} parent=39 // pred_region
        _
      $region52: #{mlp_pallas.4} parent=39 // pred_fallthru
        _
      // Predicated region
      $region53: #{mlp_pallas.4} parent=39 // pred_check
        %p589 = pneg %p176
      $region54: #{mlp_pallas.4} parent=39 // pred_check_branch
        %591 = sbr.rel (%p589) target = $region56
      $region55: #{mlp_pallas.4} parent=39 // pred_region
        _
      $region56: #{mlp_pallas.4} parent=39 // pred_fallthru
        _
      // Predicated region
      $region57: #{mlp_pallas.4} parent=39 // pred_check
        %p592 = pneg %p155
      $region58: #{mlp_pallas.4} parent=39 // pred_check_branch
        %594 = sbr.rel (%p592) target = $region60
      $region59: #{mlp_pallas.4} parent=39 // pred_region
        _
      $region60: #{mlp_pallas.4} parent=39 // pred_fallthru
        _
      // Predicated region
      $region61: #{mlp_pallas.4} parent=39 // pred_check
        %p595 = pneg %p176
      $region62: #{mlp_pallas.4} parent=39 // pred_check_branch
        %597 = sbr.rel (%p595) target = $region64
      $region63: #{mlp_pallas.4} parent=39 // pred_region
        _
      $region64: #{mlp_pallas.4} parent=39 // pred_fallthru
        _
    $region40: #{mlp_pallas.4} parent=5 // pred_fallthru
      _
    %p598 = scmp.le.s32.totalorder 2, %s13
    // Predicated region
    $region65: #{mlp_pallas.4} parent=5 // pred_check
      %p599 = pneg %p598
    $region66: #{mlp_pallas.4} parent=5 // pred_check_branch
      %601 = sbr.rel (%p599) target = $region68
    $region67: #{mlp_pallas.4} parent=5 // pred_region
      %s602 = ssub.s32 %s13, 2
    $region68: #{mlp_pallas.4} parent=5 // pred_fallthru
      _
  $region6: #{mlp_pallas.4} parent=0 // loop_footer
    %s17 = sadd.s32 1, %s13
  $region7: #{mlp_pallas.4} parent=0 // loop_footer_branch
    %12 = sbr.rel target = $region3
  $region8: #{mlp_pallas.4} parent=0 // loop_exit
    _

// kernel: mlp_pallas.3
$region0: #{mlp_pallas.3}
  #allocation0 [shape = 'u32[]', space=smem, size = 0x4, offset = 0x4, fixed_abs, tag = 'smem constant byte address 0x4 - core index']
  #allocation1 [shape = 'u32[144,128]{1,0:T(1,128)}', space=vmem, size = 0x12000, scoped, tag = 'internal scratch']
  #allocation2 [shape = 'f32[32,1]{1,0:T(8,128)}', space=vmem, size = 0x4000, scoped, tag = 'scratch operand']
  #allocation3 [shape = 'f32[32,1]{1,0:T(8,128)}', space=vmem, size = 0x4000, scoped, tag = 'scratch operand']
  %s0 = inlined_call_operand.vmem [shape: f32[2,4,256], index: 0, kind: input, shape index: {}]
  %s1 = inlined_call_operand.vmem [shape: f32[32,4], index: 1, kind: input, shape index: {}]
  %s2 = inlined_call_operand.vmem [shape: f32[32,1], index: 2, kind: output, shape index: {0}]
  %s3 = inlined_call_operand.vmem [shape: f32[32,1], index: 3, kind: output, shape index: {1}]
  %4 = xla_tuple %s2, %s3
  %s5 = sld [smem:[#allocation0]]
  $region57: #{mlp_pallas.3} parent=0
    _
  %s7 = ssub.s32 1, %s5
  %s8 = scalar_select 0, %s7, %s5
  loop: start=0, step=1, limit=4
  $region2: #{mlp_pallas.3} parent=0 // loop_pre_header
    _
  $region3: #{mlp_pallas.3} parent=0 // loop_header
    %s10 = sphi 0, %s14
    %p11 = scmp.ge.s32.totalorder %s10, 4
    %s17 = sphi 0, %s29
    %s18 = sphi 0, %s25
    %s19 = sphi 0, %s17
    %s20 = sphi 0, %s18
    %s21 = sphi 0, %s19
    %s22 = sphi 0, %s20
    %s34 = sphi 0, %s36
    %s37 = sphi 0, %s34
    %s38 = sphi 0, %s37
    %s54 = sphi 0, %s38
    %s58 = sphi 0, %s58
    %s60 = sphi 0, %s58
    %s61 = sphi 0, %s60
    %s75 = sphi 0, %s61
    %s79 = sphi 0, %s79
    %s81 = sphi 0, %s79
    %s82 = sphi 0, %s81
    %s96 = sphi 0, %s82
    %s100 = sphi 0, %s100
    %s102 = sphi 0, %s100
    %s103 = sphi 0, %s102
    %s117 = sphi 0, %s103
  $region4: #{mlp_pallas.3} parent=0 // loop_header_branch
    %13 = sbr.rel (%p11) target = $region8
  $region5: #{mlp_pallas.3} parent=0 // loop_body
    %s15 = ssub.s32 %s10, 1
    %s16 = ssub.s32 %s10, 2
    %s23 = sadd.s32 1, %s18
    %p24 = scmp.ge.s32.totalorder %s23, 1
    %s25 = scalar_select %p24, 0, %s23
    %s26 = sadd.s32 1, %s17
    %s27 = scalar_select %p24, %s26, %s17
    %p28 = scmp.ge.s32.totalorder %s27, 2
    %s29 = scalar_select %p28, 0, %s27
    %s30 = ssub.s32 %s17, %s29
    %s31 = ssub.s32 %s18, %s25
    %s32 = sor.u32 %s30, %s31
    %p33 = scmp.eq.s32.totalorder %s32, 0
    %s35 = sadd.s32 %s34, 1
    %s36 = scalar_select %p33, %s34, %s35
    %p39 = pneg %p33
    %p40 = scmp.eq.s32.totalorder %s10, 1
    %p41 = por %p39, %p40
    %p42 = scmp.ne.s32.totalorder %s34, %s37
    %p43 = scmp.eq.s32.totalorder %s10, 0
    %p44 = por %p42, %p43
    %p45 = scmp.ne.s32.totalorder %s34, %s37
    %p46 = scmp.eq.s32.totalorder %s15, 1
    %p47 = por %p45, %p46
    %p48 = scmp.ne.s32.totalorder %s37, %s38
    %p49 = scmp.eq.s32.totalorder %s15, 0
    %p50 = por %p48, %p49
    %p51 = scmp.ne.s32.totalorder %s37, %s38
    %p52 = scmp.eq.s32.totalorder %s16, 1
    %p53 = por %p51, %p52
    %p55 = scmp.ne.s32.totalorder %s38, %s54
    %p56 = scmp.eq.s32.totalorder %s16, 0
    %p57 = por %p55, %p56
    %s59 = sadd.s32 %s58, 1
    %p62 = scmp.eq.s32.totalorder %s10, 1
    %p63 = scmp.ne.s32.totalorder %s58, %s60
    %p64 = scmp.eq.s32.totalorder %s10, 0
    %p65 = por %p63, %p64
    %p66 = scmp.ne.s32.totalorder %s58, %s60
    %p67 = scmp.eq.s32.totalorder %s15, 1
    %p68 = por %p66, %p67
    %p69 = scmp.ne.s32.totalorder %s60, %s61
    %p70 = scmp.eq.s32.totalorder %s15, 0
    %p71 = por %p69, %p70
    %p72 = scmp.ne.s32.totalorder %s60, %s61
    %p73 = scmp.eq.s32.totalorder %s16, 1
    %p74 = por %p72, %p73
    %p76 = scmp.ne.s32.totalorder %s61, %s75
    %p77 = scmp.eq.s32.totalorder %s16, 0
    %p78 = por %p76, %p77
    %s80 = sadd.s32 %s79, 1
    %p83 = scmp.eq.s32.totalorder %s10, 1
    %p84 = scmp.ne.s32.totalorder %s79, %s81
    %p85 = scmp.eq.s32.totalorder %s10, 0
    %p86 = por %p84, %p85
    %p87 = scmp.ne.s32.totalorder %s79, %s81
    %p88 = scmp.eq.s32.totalorder %s15, 1
    %p89 = por %p87, %p88
    %p90 = scmp.ne.s32.totalorder %s81, %s82
    %p91 = scmp.eq.s32.totalorder %s15, 0
    %p92 = por %p90, %p91
    %p93 = scmp.ne.s32.totalorder %s81, %s82
    %p94 = scmp.eq.s32.totalorder %s16, 1
    %p95 = por %p93, %p94
    %p97 = scmp.ne.s32.totalorder %s82, %s96
    %p98 = scmp.eq.s32.totalorder %s16, 0
    %p99 = por %p97, %p98
    %s101 = sadd.s32 %s100, 1
    %p104 = scmp.eq.s32.totalorder %s10, 1
    %p105 = scmp.ne.s32.totalorder %s100, %s102
    %p106 = scmp.eq.s32.totalorder %s10, 0
    %p107 = por %p105, %p106
    %p108 = scmp.ne.s32.totalorder %s100, %s102
    %p109 = scmp.eq.s32.totalorder %s15, 1
    %p110 = por %p108, %p109
    %p111 = scmp.ne.s32.totalorder %s102, %s103
    %p112 = scmp.eq.s32.totalorder %s15, 0
    %p113 = por %p111, %p112
    %p114 = scmp.ne.s32.totalorder %s102, %s103
    %p115 = scmp.eq.s32.totalorder %s16, 1
    %p116 = por %p114, %p115
    %p118 = scmp.ne.s32.totalorder %s103, %s117
    %p119 = scmp.eq.s32.totalorder %s16, 0
    %p120 = por %p118, %p119
    %p121 = scmp.le.s32.totalorder 1, %s10
    %p122 = scmp.lt.s32.totalorder %s10, 3
    %p123 = pnand %p121, %p122
    %p124 = pneg %p123
    // Predicated region
    $region9: #{mlp_pallas.3} parent=5 // pred_check
      _
    $region10: #{mlp_pallas.3} parent=5 // pred_check_branch
      %126 = sbr.rel (%p123) target = $region12
    $region11: #{mlp_pallas.3} parent=5 // pred_region
      %s127 = ssub.s32 %s10, 1
      // Predicated region
      $region13: #{mlp_pallas.3} parent=11 // pred_check
        %p128 = pneg %p71
      $region14: #{mlp_pallas.3} parent=11 // pred_check_branch
        %130 = sbr.rel (%p128) target = $region16
      $region15: #{mlp_pallas.3} parent=11 // pred_region
        _
      $region16: #{mlp_pallas.3} parent=11 // pred_fallthru
        _
    $region12: #{mlp_pallas.3} parent=5 // pred_fallthru
      _
    %p131 = scmp.lt.s32.totalorder %s10, 2
    // Predicated region
    $region17: #{mlp_pallas.3} parent=5 // pred_check
      %p132 = pneg %p131
    $region18: #{mlp_pallas.3} parent=5 // pred_check_branch
      %134 = sbr.rel (%p132) target = $region20
    $region19: #{mlp_pallas.3} parent=5 // pred_region
      // Predicated region
      $region21: #{mlp_pallas.3} parent=19 // pred_check
        %p135 = pneg %p44
      $region22: #{mlp_pallas.3} parent=19 // pred_check_branch
        %137 = sbr.rel (%p135) target = $region24
      $region23: #{mlp_pallas.3} parent=19 // pred_region
        %s138 = smul.u32 2, %s18
        %p139 = scmp.lt.s32.totalorder %s17, 1
        %s140 = scalar_select %p139, %s17, 1
        %p141 = scmp.lt.s32.totalorder %s138, 1
        %s142 = scalar_select %p141, %s138, 1
        %s143 = smul.addr %s140, 2
        %s144 = sadd.s32 %s142, %s143
        %s145 = smul.addr %s144, 4
        %s146 = scalar_lea.vmem %s0, %s145
        %s147 = smul.u32 2, %s18
      $region24: #{mlp_pallas.3} parent=19 // pred_fallthru
        _
    $region20: #{mlp_pallas.3} parent=5 // pred_fallthru
      _
    %p148 = scmp.le.s32.totalorder 1, %s10
    %p149 = scmp.lt.s32.totalorder %s10, 3
    %p150 = pnand %p148, %p149
    %p151 = pneg %p150
    // Predicated region
    $region25: #{mlp_pallas.3} parent=5 // pred_check
      _
    $region26: #{mlp_pallas.3} parent=5 // pred_check_branch
      %153 = sbr.rel (%p150) target = $region28
    $region27: #{mlp_pallas.3} parent=5 // pred_region
      %s154 = ssub.s32 %s10, 1
      %s155 = smul.u32 2, %s20
      %p156 = scmp.lt.s32.totalorder %s19, 1
      %s157 = scalar_select %p156, %s19, 1
      %p158 = scmp.lt.s32.totalorder %s155, 1
      %s159 = scalar_select %p158, %s155, 1
      %s160 = smul.addr %s157, 2
      %s161 = sadd.s32 %s159, %s160
      %s162 = smul.addr %s161, 4
      %s163 = scalar_lea.vmem %s0, %s162
      %p164 = pneg %p50
      %p165 = pneg %p47
      %p166 = pneg %p71
      %p167 = pneg %p68
      %p168 = pneg %p92
      %p169 = pneg %p89
      %p170 = pneg %p113
      %p171 = pneg %p110
      %s172 = smul.u32 2, %s20
      %p173 = scmp.lt.s32.totalorder %s19, 1
      %s174 = scalar_select %p173, %s19, 1
      %p175 = scmp.lt.s32.totalorder %s172, 1
      %s176 = scalar_select %p175, %s172, 1
      %s177 = smul.addr %s174, 2
      %s178 = sadd.s32 %s176, %s177
      %s179 = smul.addr %s178, 4
      %s180 = scalar_lea.vmem %s0, %s179
      %s181 = smul.u32 2, %s20
      %s182 = sadd.s32 %s19, %s20
      %p183 = scmp.eq.s32.totalorder %s182, 0
      // Predicated region
      $region29: #{mlp_pallas.3} parent=27 // pred_check
        %p184 = pneg %p183
      $region30: #{mlp_pallas.3} parent=27 // pred_check_branch
        %186 = sbr.rel (%p184) target = $region32
      $region31: #{mlp_pallas.3} parent=27 // pred_region
        %vm187 = vcmask 7168
        %188 = vst.msk [vmem:[#allocation2] sm:$0xff] %vm187, 0.0
        %189 = vst.msk [vmem:[#allocation2 + $0x8] sm:$0xff] %vm187, 0.0
        %190 = vst.msk [vmem:[#allocation2 + $0x10] sm:$0xff] %vm187, 0.0
        %191 = vst.msk [vmem:[#allocation2 + $0x18] sm:$0xff] %vm187, 0.0
        %192 = vst.msk [vmem:[#allocation3] sm:$0xff] %vm187, 0.0
        %193 = vst.msk [vmem:[#allocation3 + $0x8] sm:$0xff] %vm187, 0.0
        %194 = vst.msk [vmem:[#allocation3 + $0x10] sm:$0xff] %vm187, 0.0
        %195 = vst.msk [vmem:[#allocation3 + $0x18] sm:$0xff] %vm187, 0.0
      $region32: #{mlp_pallas.3} parent=27 // pred_fallthru
        _
      %v196 = vld [vmem:[%s1] sm:$0xff]
      %v197 = vld [vmem:[%s1 + $0x8] sm:$0xff]
      %v198 = vld [vmem:[%s1 + $0x10] sm:$0xff]
      %v199 = vld [vmem:[%s1 + $0x18] sm:$0xff]
      %v200 = vld [vmem:[%s180] sm:$0xff]
      %v202 = vcombine.high %v200, %v200
      %vm203 = vcmask 31744
      %v205 = vsel %vm203, %v196, 0
      %v208 = vsel %vm203, %v197, 0
      %v211 = vsel %vm203, %v198, 0
      %v214 = vsel %vm203, %v199, 0
      %vm216 = vcmask 1043456
      %v217 = vsel %vm216, %v200, 0
      %v219 = vsel %vm216, %v202, 0
      %221 = vmatprep.subr.mxu0 0.0
      %222 = vmatpush1.msra.mxu0 0.0
      %223 = vmatprep.subr.mxu0 0.0
      %224 = vmatpush1.msra.mxu0 0.0
      %225 = vmatprep.subr.mxu0 0.0
      %226 = vmatpush1.msra.mxu0 0.0
      %227 = vmatprep.subr.mxu0 0.0
      %228 = vmatpush1.msra.mxu0 0.0
      %229 = vmatprep.subr.mxu0 0.0
      %230 = vmatpush1.msra.mxu0 0.0
      %231 = vmatprep.subr.mxu0 0.0
      %232 = vmatpush1.msra.mxu0 0.0
      %233 = vmatprep.subr.mxu0 0.0
      %234 = vmatpush1.msra.mxu0 0.0
      %235 = vmatprep.subr.mxu0 0.0
      %236 = vmatpush1.msra.mxu0 0.0
      %237 = vmatprep.subr.mxu0 0.0
      %238 = vmatpush1.msra.mxu0 0.0
      %239 = vmatprep.subr.mxu0 0.0
      %240 = vmatpush1.msra.mxu0 0.0
      %241 = vmatprep.subr.mxu0 0.0
      %242 = vmatpush1.msra.mxu0 0.0
      %243 = vmatprep.subr.mxu0 0.0
      %244 = vmatpush1.msra.mxu0 0.0
      %245 = vmatprep.subr.mxu0 0.0
      %246 = vmatpush1.msra.mxu0 0.0
      %247 = vmatprep.subr.mxu0 0.0
      %248 = vmatpush1.msra.mxu0 0.0
      %249 = vmatprep.subr.mxu0 0.0
      %250 = vmatpush1.msra.mxu0 0.0
      %251 = vmatprep.subr.mxu0 %v219
      %252 = vmatpush1.msra.mxu0 %v217
      %253 = vmatprep.subr.mxu0 0.0
      %254 = vmatpush2.msra.mxu0 0.0
      %255 = vmatprep.subr.mxu0 0.0
      %256 = vmatpush2.msra.mxu0 0.0
      %257 = vmatprep.subr.mxu0 0.0
      %258 = vmatpush2.msra.mxu0 0.0
      %259 = vmatprep.subr.mxu0 0.0
      %260 = vmatpush2.msra.mxu0 0.0
      %261 = vmatprep.subr.mxu0 0.0
      %262 = vmatpush2.msra.mxu0 0.0
      %263 = vmatprep.subr.mxu0 0.0
      %264 = vmatpush2.msra.mxu0 0.0
      %265 = vmatprep.subr.mxu0 0.0
      %266 = vmatpush2.msra.mxu0 0.0
      %267 = vmatprep.subr.mxu0 0.0
      %268 = vmatpush2.msra.mxu0 0.0
      %269 = vmatprep.subr.mxu0 0.0
      %270 = vmatpush2.msra.mxu0 0.0
      %271 = vmatprep.subr.mxu0 0.0
      %272 = vmatpush2.msra.mxu0 0.0
      %273 = vmatprep.subr.mxu0 0.0
      %274 = vmatpush2.msra.mxu0 0.0
      %275 = vmatprep.subr.mxu0 0.0
      %276 = vmatpush2.msra.mxu0 0.0
      %277 = vmatprep.subr.mxu0 0.0
      %278 = vmatpush2.msra.mxu0 0.0
      %279 = vmatprep.subr.mxu0 0.0
      %280 = vmatpush2.msra.mxu0 0.0
      %281 = vmatprep.subr.mxu0 0.0
      %282 = vmatpush2.msra.mxu0 0.0
      %283 = vmatprep.subr.mxu0 0.0
      %284 = vmatpush2.msra.mxu0 0.0
      %285 = vmatprep.mubr.f32.mxu0 0.0
      %286 = vmatmul.mubr.f32.gmra.mxu0 %v205
      %v287 = vpop.f32.mrf.mxu0
      %v288 = vadd.f32 0.0, %v287
      %v289 = vpop.f32.mrf.mxu0
      %v290 = vadd.f32 0.0, %v289
      %291 = vmatprep.mubr.f32.mxu0 0.0
      %292 = vmatmul.mubr.f32.gmra.mxu0 %v208
      %v293 = vpop.f32.mrf.mxu0
      %v294 = vadd.f32 0.0, %v293
      %v295 = vpop.f32.mrf.mxu0
      %v296 = vadd.f32 0.0, %v295
      %297 = vmatprep.mubr.f32.mxu0 0.0
      %298 = vmatmul.mubr.f32.gmra.mxu0 %v211
      %v299 = vpop.f32.mrf.mxu0
      %v300 = vadd.f32 0.0, %v299
      %v301 = vpop.f32.mrf.mxu0
      %v302 = vadd.f32 0.0, %v301
      %303 = vmatprep.mubr.f32.mxu0 0.0
      %304 = vmatmul.mubr.f32.gmra.mxu0 %v214
      %v305 = vpop.f32.mrf.mxu0
      %v306 = vadd.f32 0.0, %v305
      %v307 = vpop.f32.mrf.mxu0
      %v308 = vadd.f32 0.0, %v307
      %309 = vdwg.mxu0
      %v310 = vadd.f32 %v288, %v290
      %311 = vadd.xlane.f32.xlu0 %v310
      %v312 = vpop.xlane.xlu0 %311
      %v313 = vadd.f32 %v294, %v296
      %314 = vadd.xlane.f32.xlu0 %v313
      %v315 = vpop.xlane.xlu0 %314
      %v316 = vadd.f32 %v300, %v302
      %317 = vadd.xlane.f32.xlu0 %v316
      %v318 = vpop.xlane.xlu0 %317
      %v319 = vadd.f32 %v306, %v308
      %320 = vadd.xlane.f32.xlu0 %v319
      %v321 = vpop.xlane.xlu0 %320
      %v322 = vrcp.pop 256.0
      %v323 = vmul.f32 %v312, %v322
      %v324 = vmul.f32 %v315, %v322
      %v325 = vmul.f32 %v318, %v322
      %v326 = vmul.f32 %v321, %v322
      %v327 = vsub.f32 %v288, %v323
      %v328 = vsub.f32 %v290, %v323
      %v329 = vsub.f32 %v294, %v324
      %v330 = vsub.f32 %v296, %v324
      %v331 = vsub.f32 %v300, %v325
      %v332 = vsub.f32 %v302, %v325
      %v333 = vsub.f32 %v306, %v326
      %v334 = vsub.f32 %v308, %v326
      %v335 = vmul.f32 %v327, %v327
      %v336 = vmul.f32 %v328, %v328
      %v337 = vmul.f32 %v329, %v329
      %v338 = vmul.f32 %v330, %v330
      %v339 = vmul.f32 %v331, %v331
      %v340 = vmul.f32 %v332, %v332
      %v341 = vmul.f32 %v333, %v333
      %v342 = vmul.f32 %v334, %v334
      %v343 = vadd.f32 %v335, %v336
      %344 = vadd.xlane.f32.xlu0 %v343
      %v345 = vpop.xlane.xlu0 %344
      %v346 = vadd.f32 %v337, %v338
      %347 = vadd.xlane.f32.xlu0 %v346
      %v348 = vpop.xlane.xlu0 %347
      %v349 = vadd.f32 %v339, %v340
      %350 = vadd.xlane.f32.xlu0 %v349
      %v351 = vpop.xlane.xlu0 %350
      %v352 = vadd.f32 %v341, %v342
      %353 = vadd.xlane.f32.xlu0 %v352
      %v354 = vpop.xlane.xlu0 %353
      %s355 = smul.u32 %s182, 256
      %s356 = scvt.s32.f32 %s355
      %s357 = sadd.f32 %s356, 256.0
      %v358 = vld [vmem:[#allocation2] sm:$0xff]
      %v359 = vld [vmem:[#allocation2 + $0x8] sm:$0xff]
      %v360 = vld [vmem:[#allocation2 + $0x10] sm:$0xff]
      %v361 = vld [vmem:[#allocation2 + $0x18] sm:$0xff]
      %v362 = vsub.f32 %v323, %v358
      %v363 = vsub.f32 %v324, %v359
      %v364 = vsub.f32 %v325, %v360
      %v365 = vsub.f32 %v326, %v361
      %v366 = vstv %s357
      %v367 = vrcp.pop %v366
      %s368 = vtos %v367
      %s369 = smul.f32 256.0, %s368
      %v370 = vstv %s369
      %v371 = vmul.f32 %v362, %v370
      %v372 = vmul.f32 %v363, %v370
      %v373 = vmul.f32 %v364, %v370
      %v374 = vmul.f32 %v365, %v370
      %v375 = vadd.f32 %v358, %v371
      %v376 = vadd.f32 %v359, %v372
      %v377 = vadd.f32 %v360, %v373
      %v378 = vadd.f32 %v361, %v374
      %vm379 = vcmask 7168
      %380 = vst.msk [vmem:[#allocation2] sm:$0xff] %vm379, %v375
      %381 = vst.msk [vmem:[#allocation2 + $0x8] sm:$0xff] %vm379, %v376
      %382 = vst.msk [vmem:[#allocation2 + $0x10] sm:$0xff] %vm379, %v377
      %383 = vst.msk [vmem:[#allocation2 + $0x18] sm:$0xff] %vm379, %v378
      %v384 = vld [vmem:[#allocation3] sm:$0xff]
      %v385 = vld [vmem:[#allocation3 + $0x8] sm:$0xff]
      %v386 = vld [vmem:[#allocation3 + $0x10] sm:$0xff]
      %v387 = vld [vmem:[#allocation3 + $0x18] sm:$0xff]
      %v388 = vadd.f32 %v384, %v345
      %v389 = vadd.f32 %v385, %v348
      %v390 = vadd.f32 %v386, %v351
      %v391 = vadd.f32 %v387, %v354
      %v392 = vmul.f32 %v362, %v362
      %v393 = vmul.f32 %v363, %v363
      %v394 = vmul.f32 %v364, %v364
      %v395 = vmul.f32 %v365, %v365
      %s396 = smul.f32 %s356, 256.0
      %v397 = vstv %s357
      %v398 = vrcp.pop %v397
      %s399 = vtos %v398
      %s400 = smul.f32 %s396, %s399
      %v401 = vstv %s400
      %v402 = vmul.f32 %v392, %v401
      %v403 = vmul.f32 %v393, %v401
      %v404 = vmul.f32 %v394, %v401
      %v405 = vmul.f32 %v395, %v401
      %v406 = vadd.f32 %v388, %v402
      %v407 = vadd.f32 %v389, %v403
      %v408 = vadd.f32 %v390, %v404
      %v409 = vadd.f32 %v391, %v405
      %410 = vst.msk [vmem:[#allocation3] sm:$0xff] %vm379, %v406
      %411 = vst.msk [vmem:[#allocation3 + $0x8] sm:$0xff] %vm379, %v407
      %412 = vst.msk [vmem:[#allocation3 + $0x10] sm:$0xff] %vm379, %v408
      %413 = vst.msk [vmem:[#allocation3 + $0x18] sm:$0xff] %vm379, %v409
      %p414 = scmp.eq.s32.totalorder %s182, 1
      // Predicated region
      $region33: #{mlp_pallas.3} parent=27 // pred_check
        %p415 = pneg %p414
      $region34: #{mlp_pallas.3} parent=27 // pred_check_branch
        %417 = sbr.rel (%p415) target = $region36
      $region35: #{mlp_pallas.3} parent=27 // pred_region
        %v418 = vld [vmem:[#allocation3] sm:$0xff]
        %v419 = vld [vmem:[#allocation3 + $0x8] sm:$0xff]
        %v420 = vld [vmem:[#allocation3 + $0x10] sm:$0xff]
        %v421 = vld [vmem:[#allocation3 + $0x18] sm:$0xff]
        %v422 = vstv %s357
        %v423 = vrcp.pop %v422
        %v424 = vmul.f32 %v418, %v423
        %v425 = vmul.f32 %v419, %v423
        %v426 = vmul.f32 %v420, %v423
        %v427 = vmul.f32 %v421, %v423
        %v428 = vadd.f32 %v424, 1e-05
        %v429 = vadd.f32 %v425, 1e-05
        %v430 = vadd.f32 %v426, 1e-05
        %v431 = vadd.f32 %v427, 1e-05
        %v432 = vrsqrt.pop %v428
        %v433 = vrsqrt.pop %v429
        %v434 = vrsqrt.pop %v430
        %v435 = vrsqrt.pop %v431
        %436 = vst.msk [vmem:[%s2] sm:$0xff] %vm379, %v432
        %437 = vst.msk [vmem:[%s2 + $0x8] sm:$0xff] %vm379, %v433
        %438 = vst.msk [vmem:[%s2 + $0x10] sm:$0xff] %vm379, %v434
        %439 = vst.msk [vmem:[%s2 + $0x18] sm:$0xff] %vm379, %v435
        %v440 = vld [vmem:[#allocation2] sm:$0xff]
        %v441 = vld [vmem:[#allocation2 + $0x8] sm:$0xff]
        %v442 = vld [vmem:[#allocation2 + $0x10] sm:$0xff]
        %v443 = vld [vmem:[#allocation2 + $0x18] sm:$0xff]
        %v444 = vsub.f32 0.0, %v440
        %v445 = vsub.f32 0.0, %v441
        %v446 = vsub.f32 0.0, %v442
        %v447 = vsub.f32 0.0, %v443
        %v448 = vmul.f32 %v444, %v432
        %v449 = vmul.f32 %v445, %v433
        %v450 = vmul.f32 %v446, %v434
        %v451 = vmul.f32 %v447, %v435
        %452 = vst.msk [vmem:[%s3] sm:$0xff] %vm379, %v448
        %453 = vst.msk [vmem:[%s3 + $0x8] sm:$0xff] %vm379, %v449
        %454 = vst.msk [vmem:[%s3 + $0x10] sm:$0xff] %vm379, %v450
        %455 = vst.msk [vmem:[%s3 + $0x18] sm:$0xff] %vm379, %v451
      $region36: #{mlp_pallas.3} parent=27 // pred_fallthru
        _
      // Predicated region
      $region37: #{mlp_pallas.3} parent=27 // pred_check
        %p456 = pneg %p89
      $region38: #{mlp_pallas.3} parent=27 // pred_check_branch
        %458 = sbr.rel (%p456) target = $region40
      $region39: #{mlp_pallas.3} parent=27 // pred_region
        _
      $region40: #{mlp_pallas.3} parent=27 // pred_fallthru
        _
      // Predicated region
      $region41: #{mlp_pallas.3} parent=27 // pred_check
        %p459 = pneg %p110
      $region42: #{mlp_pallas.3} parent=27 // pred_check_branch
        %461 = sbr.rel (%p459) target = $region44
      $region43: #{mlp_pallas.3} parent=27 // pred_region
        _
      $region44: #{mlp_pallas.3} parent=27 // pred_fallthru
        _
      // Predicated region
      $region45: #{mlp_pallas.3} parent=27 // pred_check
        %p462 = pneg %p89
      $region46: #{mlp_pallas.3} parent=27 // pred_check_branch
        %464 = sbr.rel (%p462) target = $region48
      $region47: #{mlp_pallas.3} parent=27 // pred_region
        _
      $region48: #{mlp_pallas.3} parent=27 // pred_fallthru
        _
      // Predicated region
      $region49: #{mlp_pallas.3} parent=27 // pred_check
        %p465 = pneg %p110
      $region50: #{mlp_pallas.3} parent=27 // pred_check_branch
        %467 = sbr.rel (%p465) target = $region52
      $region51: #{mlp_pallas.3} parent=27 // pred_region
        _
      $region52: #{mlp_pallas.3} parent=27 // pred_fallthru
        _
    $region28: #{mlp_pallas.3} parent=5 // pred_fallthru
      _
    %p468 = scmp.le.s32.totalorder 2, %s10
    // Predicated region
    $region53: #{mlp_pallas.3} parent=5 // pred_check
      %p469 = pneg %p468
    $region54: #{mlp_pallas.3} parent=5 // pred_check_branch
      %471 = sbr.rel (%p469) target = $region56
    $region55: #{mlp_pallas.3} parent=5 // pred_region
      %s472 = ssub.s32 %s10, 2
    $region56: #{mlp_pallas.3} parent=5 // pred_fallthru
      _
  $region6: #{mlp_pallas.3} parent=0 // loop_footer
    %s14 = sadd.s32 1, %s10
  $region7: #{mlp_pallas.3} parent=0 // loop_footer_branch
    %9 = sbr.rel target = $region3
  $region8: #{mlp_pallas.3} parent=0 // loop_exit
    _

// kernel: mlp_pallas.5
$region0: #{mlp_pallas.5}
  #allocation0 [shape = 'u32[]', space=smem, size = 0x4, offset = 0x4, fixed_abs, tag = 'smem constant byte address 0x4 - core index']
  #allocation1 [shape = 'u32[144,128]{1,0:T(1,128)}', space=vmem, size = 0x12000, scoped, tag = 'internal scratch']
  %s0 = inlined_call_operand.vmem [shape: f32[2,4,256], index: 0, kind: input, shape index: {}]
  %s1 = inlined_call_operand.vmem [shape: f32[32,4], index: 1, kind: input, shape index: {}]
  %s2 = inlined_call_operand.vmem [shape: f32[32,1], index: 2, kind: input, shape index: {}]
  %s3 = inlined_call_operand.vmem [shape: f32[32,1], index: 3, kind: input, shape index: {}]
  %s4 = inlined_call_operand.vmem [shape: f32[8,32], index: 4, kind: input, shape index: {}]
  %s5 = inlined_call_operand.vmem [shape: f32[8,1], index: 5, kind: input, shape index: {}]
  %s6 = inlined_call_operand.vmem [shape: f32[8,1], index: 6, kind: input, shape index: {}]
  %s7 = inlined_call_operand.vmem [shape: f32[2,8,256], index: 7, kind: output, shape index: {}]
  %s8 = sld [smem:[#allocation0]]
  $region61: #{mlp_pallas.5} parent=0
    _
  %s10 = ssub.s32 1, %s8
  %s11 = scalar_select 0, %s10, %s8
  loop: start=0, step=1, limit=4
  $region2: #{mlp_pallas.5} parent=0 // loop_pre_header
    _
  $region3: #{mlp_pallas.5} parent=0 // loop_header
    %s13 = sphi 0, %s17
    %p14 = scmp.ge.s32.totalorder %s13, 4
    %s20 = sphi 0, %s32
    %s21 = sphi 0, %s28
    %s22 = sphi 0, %s20
    %s23 = sphi 0, %s21
    %s24 = sphi 0, %s22
    %s25 = sphi 0, %s23
    %s37 = sphi 0, %s39
    %s40 = sphi 0, %s37
    %s41 = sphi 0, %s40
    %s57 = sphi 0, %s41
    %s61 = sphi 0, %s61
    %s63 = sphi 0, %s61
    %s64 = sphi 0, %s63
    %s78 = sphi 0, %s64
    %s82 = sphi 0, %s82
    %s84 = sphi 0, %s82
    %s85 = sphi 0, %s84
    %s99 = sphi 0, %s85
    %s103 = sphi 0, %s103
    %s105 = sphi 0, %s103
    %s106 = sphi 0, %s105
    %s120 = sphi 0, %s106
    %s124 = sphi 0, %s124
    %s126 = sphi 0, %s124
    %s127 = sphi 0, %s126
    %s141 = sphi 0, %s127
    %s145 = sphi 0, %s145
    %s147 = sphi 0, %s145
    %s148 = sphi 0, %s147
    %s162 = sphi 0, %s148
    %s166 = sphi 0, %s166
    %s168 = sphi 0, %s166
    %s169 = sphi 0, %s168
    %s183 = sphi 0, %s169
    %s191 = sphi 0, %s193
    %s194 = sphi 0, %s191
    %s195 = sphi 0, %s194
    %s211 = sphi 0, %s195
  $region4: #{mlp_pallas.5} parent=0 // loop_header_branch
    %16 = sbr.rel (%p14) target = $region8
  $region5: #{mlp_pallas.5} parent=0 // loop_body
    %s18 = ssub.s32 %s13, 1
    %s19 = ssub.s32 %s13, 2
    %s26 = sadd.s32 1, %s21
    %p27 = scmp.ge.s32.totalorder %s26, 1
    %s28 = scalar_select %p27, 0, %s26
    %s29 = sadd.s32 1, %s20
    %s30 = scalar_select %p27, %s29, %s20
    %p31 = scmp.ge.s32.totalorder %s30, 2
    %s32 = scalar_select %p31, 0, %s30
    %s33 = ssub.s32 %s20, %s32
    %s34 = ssub.s32 %s21, %s28
    %s35 = sor.u32 %s33, %s34
    %p36 = scmp.eq.s32.totalorder %s35, 0
    %s38 = sadd.s32 %s37, 1
    %s39 = scalar_select %p36, %s37, %s38
    %p42 = pneg %p36
    %p43 = scmp.eq.s32.totalorder %s13, 1
    %p44 = por %p42, %p43
    %p45 = scmp.ne.s32.totalorder %s37, %s40
    %p46 = scmp.eq.s32.totalorder %s13, 0
    %p47 = por %p45, %p46
    %p48 = scmp.ne.s32.totalorder %s37, %s40
    %p49 = scmp.eq.s32.totalorder %s18, 1
    %p50 = por %p48, %p49
    %p51 = scmp.ne.s32.totalorder %s40, %s41
    %p52 = scmp.eq.s32.totalorder %s18, 0
    %p53 = por %p51, %p52
    %p54 = scmp.ne.s32.totalorder %s40, %s41
    %p55 = scmp.eq.s32.totalorder %s19, 1
    %p56 = por %p54, %p55
    %p58 = scmp.ne.s32.totalorder %s41, %s57
    %p59 = scmp.eq.s32.totalorder %s19, 0
    %p60 = por %p58, %p59
    %s62 = sadd.s32 %s61, 1
    %p65 = scmp.eq.s32.totalorder %s13, 1
    %p66 = scmp.ne.s32.totalorder %s61, %s63
    %p67 = scmp.eq.s32.totalorder %s13, 0
    %p68 = por %p66, %p67
    %p69 = scmp.ne.s32.totalorder %s61, %s63
    %p70 = scmp.eq.s32.totalorder %s18, 1
    %p71 = por %p69, %p70
    %p72 = scmp.ne.s32.totalorder %s63, %s64
    %p73 = scmp.eq.s32.totalorder %s18, 0
    %p74 = por %p72, %p73
    %p75 = scmp.ne.s32.totalorder %s63, %s64
    %p76 = scmp.eq.s32.totalorder %s19, 1
    %p77 = por %p75, %p76
    %p79 = scmp.ne.s32.totalorder %s64, %s78
    %p80 = scmp.eq.s32.totalorder %s19, 0
    %p81 = por %p79, %p80
    %s83 = sadd.s32 %s82, 1
    %p86 = scmp.eq.s32.totalorder %s13, 1
    %p87 = scmp.ne.s32.totalorder %s82, %s84
    %p88 = scmp.eq.s32.totalorder %s13, 0
    %p89 = por %p87, %p88
    %p90 = scmp.ne.s32.totalorder %s82, %s84
    %p91 = scmp.eq.s32.totalorder %s18, 1
    %p92 = por %p90, %p91
    %p93 = scmp.ne.s32.totalorder %s84, %s85
    %p94 = scmp.eq.s32.totalorder %s18, 0
    %p95 = por %p93, %p94
    %p96 = scmp.ne.s32.totalorder %s84, %s85
    %p97 = scmp.eq.s32.totalorder %s19, 1
    %p98 = por %p96, %p97
    %p100 = scmp.ne.s32.totalorder %s85, %s99
    %p101 = scmp.eq.s32.totalorder %s19, 0
    %p102 = por %p100, %p101
    %s104 = sadd.s32 %s103, 1
    %p107 = scmp.eq.s32.totalorder %s13, 1
    %p108 = scmp.ne.s32.totalorder %s103, %s105
    %p109 = scmp.eq.s32.totalorder %s13, 0
    %p110 = por %p108, %p109
    %p111 = scmp.ne.s32.totalorder %s103, %s105
    %p112 = scmp.eq.s32.totalorder %s18, 1
    %p113 = por %p111, %p112
    %p114 = scmp.ne.s32.totalorder %s105, %s106
    %p115 = scmp.eq.s32.totalorder %s18, 0
    %p116 = por %p114, %p115
    %p117 = scmp.ne.s32.totalorder %s105, %s106
    %p118 = scmp.eq.s32.totalorder %s19, 1
    %p119 = por %p117, %p118
    %p121 = scmp.ne.s32.totalorder %s106, %s120
    %p122 = scmp.eq.s32.totalorder %s19, 0
    %p123 = por %p121, %p122
    %s125 = sadd.s32 %s124, 1
    %p128 = scmp.eq.s32.totalorder %s13, 1
    %p129 = scmp.ne.s32.totalorder %s124, %s126
    %p130 = scmp.eq.s32.totalorder %s13, 0
    %p131 = por %p129, %p130
    %p132 = scmp.ne.s32.totalorder %s124, %s126
    %p133 = scmp.eq.s32.totalorder %s18, 1
    %p134 = por %p132, %p133
    %p135 = scmp.ne.s32.totalorder %s126, %s127
    %p136 = scmp.eq.s32.totalorder %s18, 0
    %p137 = por %p135, %p136
    %p138 = scmp.ne.s32.totalorder %s126, %s127
    %p139 = scmp.eq.s32.totalorder %s19, 1
    %p140 = por %p138, %p139
    %p142 = scmp.ne.s32.totalorder %s127, %s141
    %p143 = scmp.eq.s32.totalorder %s19, 0
    %p144 = por %p142, %p143
    %s146 = sadd.s32 %s145, 1
    %p149 = scmp.eq.s32.totalorder %s13, 1
    %p150 = scmp.ne.s32.totalorder %s145, %s147
    %p151 = scmp.eq.s32.totalorder %s13, 0
    %p152 = por %p150, %p151
    %p153 = scmp.ne.s32.totalorder %s145, %s147
    %p154 = scmp.eq.s32.totalorder %s18, 1
    %p155 = por %p153, %p154
    %p156 = scmp.ne.s32.totalorder %s147, %s148
    %p157 = scmp.eq.s32.totalorder %s18, 0
    %p158 = por %p156, %p157
    %p159 = scmp.ne.s32.totalorder %s147, %s148
    %p160 = scmp.eq.s32.totalorder %s19, 1
    %p161 = por %p159, %p160
    %p163 = scmp.ne.s32.totalorder %s148, %s162
    %p164 = scmp.eq.s32.totalorder %s19, 0
    %p165 = por %p163, %p164
    %s167 = sadd.s32 %s166, 1
    %p170 = scmp.eq.s32.totalorder %s13, 1
    %p171 = scmp.ne.s32.totalorder %s166, %s168
    %p172 = scmp.eq.s32.totalorder %s13, 0
    %p173 = por %p171, %p172
    %p174 = scmp.ne.s32.totalorder %s166, %s168
    %p175 = scmp.eq.s32.totalorder %s18, 1
    %p176 = por %p174, %p175
    %p177 = scmp.ne.s32.totalorder %s168, %s169
    %p178 = scmp.eq.s32.totalorder %s18, 0
    %p179 = por %p177, %p178
    %p180 = scmp.ne.s32.totalorder %s168, %s169
    %p181 = scmp.eq.s32.totalorder %s19, 1
    %p182 = por %p180, %p181
    %p184 = scmp.ne.s32.totalorder %s169, %s183
    %p185 = scmp.eq.s32.totalorder %s19, 0
    %p186 = por %p184, %p185
    %s187 = ssub.s32 %s20, %s32
    %s188 = ssub.s32 %s21, %s28
    %s189 = sor.u32 %s187, %s188
    %p190 = scmp.eq.s32.totalorder %s189, 0
    %s192 = sadd.s32 %s191, 1
    %s193 = scalar_select %p190, %s191, %s192
    %p196 = pneg %p190
    %p197 = scmp.eq.s32.totalorder %s13, 1
    %p198 = por %p196, %p197
    %p199 = scmp.ne.s32.totalorder %s191, %s194
    %p200 = scmp.eq.s32.totalorder %s13, 0
    %p201 = por %p199, %p200
    %p202 = scmp.ne.s32.totalorder %s191, %s194
    %p203 = scmp.eq.s32.totalorder %s18, 1
    %p204 = por %p202, %p203
    %p205 = scmp.ne.s32.totalorder %s194, %s195
    %p206 = scmp.eq.s32.totalorder %s18, 0
    %p207 = por %p205, %p206
    %p208 = scmp.ne.s32.totalorder %s194, %s195
    %p209 = scmp.eq.s32.totalorder %s19, 1
    %p210 = por %p208, %p209
    %p212 = scmp.ne.s32.totalorder %s195, %s211
    %p213 = scmp.eq.s32.totalorder %s19, 0
    %p214 = por %p212, %p213
    %p215 = scmp.le.s32.totalorder 1, %s13
    %p216 = scmp.lt.s32.totalorder %s13, 3
    %p217 = pnand %p215, %p216
    %p218 = pneg %p217
    // Predicated region
    $region9: #{mlp_pallas.5} parent=5 // pred_check
      _
    $region10: #{mlp_pallas.5} parent=5 // pred_check_branch
      %220 = sbr.rel (%p217) target = $region12
    $region11: #{mlp_pallas.5} parent=5 // pred_region
      %s221 = ssub.s32 %s13, 1
      // Predicated region
      $region13: #{mlp_pallas.5} parent=11 // pred_check
        %p222 = pneg %p74
      $region14: #{mlp_pallas.5} parent=11 // pred_check_branch
        %224 = sbr.rel (%p222) target = $region16
      $region15: #{mlp_pallas.5} parent=11 // pred_region
        _
      $region16: #{mlp_pallas.5} parent=11 // pred_fallthru
        _
      // Predicated region
      $region17: #{mlp_pallas.5} parent=11 // pred_check
        %p225 = pneg %p95
      $region18: #{mlp_pallas.5} parent=11 // pred_check_branch
        %227 = sbr.rel (%p225) target = $region20
      $region19: #{mlp_pallas.5} parent=11 // pred_region
        _
      $region20: #{mlp_pallas.5} parent=11 // pred_fallthru
        _
      // Predicated region
      $region21: #{mlp_pallas.5} parent=11 // pred_check
        %p228 = pneg %p116
      $region22: #{mlp_pallas.5} parent=11 // pred_check_branch
        %230 = sbr.rel (%p228) target = $region24
      $region23: #{mlp_pallas.5} parent=11 // pred_region
        _
      $region24: #{mlp_pallas.5} parent=11 // pred_fallthru
        _
      // Predicated region
      $region25: #{mlp_pallas.5} parent=11 // pred_check
        %p231 = pneg %p137
      $region26: #{mlp_pallas.5} parent=11 // pred_check_branch
        %233 = sbr.rel (%p231) target = $region28
      $region27: #{mlp_pallas.5} parent=11 // pred_region
        _
      $region28: #{mlp_pallas.5} parent=11 // pred_fallthru
        _
      // Predicated region
      $region29: #{mlp_pallas.5} parent=11 // pred_check
        %p234 = pneg %p158
      $region30: #{mlp_pallas.5} parent=11 // pred_check_branch
        %236 = sbr.rel (%p234) target = $region32
      $region31: #{mlp_pallas.5} parent=11 // pred_region
        _
      $region32: #{mlp_pallas.5} parent=11 // pred_fallthru
        _
      // Predicated region
      $region33: #{mlp_pallas.5} parent=11 // pred_check
        %p237 = pneg %p179
      $region34: #{mlp_pallas.5} parent=11 // pred_check_branch
        %239 = sbr.rel (%p237) target = $region36
      $region35: #{mlp_pallas.5} parent=11 // pred_region
        _
      $region36: #{mlp_pallas.5} parent=11 // pred_fallthru
        _
    $region12: #{mlp_pallas.5} parent=5 // pred_fallthru
      _
    %p240 = scmp.lt.s32.totalorder %s13, 2
    // Predicated region
    $region37: #{mlp_pallas.5} parent=5 // pred_check
      %p241 = pneg %p240
    $region38: #{mlp_pallas.5} parent=5 // pred_check_branch
      %243 = sbr.rel (%p241) target = $region40
    $region39: #{mlp_pallas.5} parent=5 // pred_region
      // Predicated region
      $region41: #{mlp_pallas.5} parent=39 // pred_check
        %p244 = pneg %p47
      $region42: #{mlp_pallas.5} parent=39 // pred_check_branch
        %246 = sbr.rel (%p244) target = $region44
      $region43: #{mlp_pallas.5} parent=39 // pred_region
        %s247 = smul.u32 2, %s21
        %p248 = scmp.lt.s32.totalorder %s20, 1
        %s249 = scalar_select %p248, %s20, 1
        %p250 = scmp.lt.s32.totalorder %s247, 1
        %s251 = scalar_select %p250, %s247, 1
        %s252 = smul.addr %s249, 2
        %s253 = sadd.s32 %s251, %s252
        %s254 = smul.addr %s253, 4
        %s255 = scalar_lea.vmem %s0, %s254
        %s256 = smul.u32 2, %s21
      $region44: #{mlp_pallas.5} parent=39 // pred_fallthru
        _
    $region40: #{mlp_pallas.5} parent=5 // pred_fallthru
      _
    %p257 = scmp.le.s32.totalorder 1, %s13
    %p258 = scmp.lt.s32.totalorder %s13, 3
    %p259 = pnand %p257, %p258
    %p260 = pneg %p259
    // Predicated region
    $region45: #{mlp_pallas.5} parent=5 // pred_check
      _
    $region46: #{mlp_pallas.5} parent=5 // pred_check_branch
      %262 = sbr.rel (%p259) target = $region48
    $region47: #{mlp_pallas.5} parent=5 // pred_region
      %s263 = ssub.s32 %s13, 1
      %s264 = smul.u32 2, %s23
      %p265 = scmp.lt.s32.totalorder %s22, 1
      %s266 = scalar_select %p265, %s22, 1
      %p267 = scmp.lt.s32.totalorder %s264, 1
      %s268 = scalar_select %p267, %s264, 1
      %s269 = smul.addr %s266, 2
      %s270 = sadd.s32 %s268, %s269
      %s271 = smul.addr %s270, 4
      %s272 = scalar_lea.vmem %s0, %s271
      %p273 = pneg %p53
      %p274 = pneg %p50
      %p275 = pneg %p74
      %p276 = pneg %p71
      %p277 = pneg %p95
      %p278 = pneg %p92
      %p279 = pneg %p116
      %p280 = pneg %p113
      %p281 = pneg %p137
      %p282 = pneg %p134
      %p283 = pneg %p158
      %p284 = pneg %p155
      %p285 = pneg %p179
      %p286 = pneg %p176
      %p287 = pneg %p207
      %p288 = pneg %p204
      %s289 = smul.u32 2, %s23
      %p290 = scmp.lt.s32.totalorder %s22, 1
      %s291 = scalar_select %p290, %s22, 1
      %p292 = scmp.lt.s32.totalorder %s289, 1
      %s293 = scalar_select %p292, %s289, 1
      %s294 = smul.addr %s291, 2
      %s295 = sadd.s32 %s293, %s294
      %s296 = smul.addr %s295, 8
      %s297 = scalar_lea.vmem %s7, %s296
      %s298 = smul.u32 2, %s23
      %p299 = scmp.lt.s32.totalorder %s22, 1
      %s300 = scalar_select %p299, %s22, 1
      %p301 = scmp.lt.s32.totalorder %s298, 1
      %s302 = scalar_select %p301, %s298, 1
      %s303 = smul.addr %s300, 2
      %s304 = sadd.s32 %s302, %s303
      %s305 = smul.addr %s304, 4
      %s306 = scalar_lea.vmem %s0, %s305
      %s307 = smul.u32 2, %s23
      %s308 = smul.u32 2, %s23
      %p309 = scmp.lt.s32.totalorder %s22, 1
      %s310 = scalar_select %p309, %s22, 1
      %p311 = scmp.lt.s32.totalorder %s308, 1
      %s312 = scalar_select %p311, %s308, 1
      %s313 = smul.addr %s310, 2
      %s314 = sadd.s32 %s312, %s313
      %s315 = smul.addr %s314, 8
      %s316 = scalar_lea.vmem %s7, %s315
      %s317 = smul.u32 2, %s23
      %v318 = vld [vmem:[%s1] sm:$0xff]
      %v319 = vld [vmem:[%s1 + $0x8] sm:$0xff]
      %v320 = vld [vmem:[%s1 + $0x10] sm:$0xff]
      %v321 = vld [vmem:[%s1 + $0x18] sm:$0xff]
      %v322 = vld [vmem:[%s306] sm:$0xff]
      %v324 = vcombine.high %v322, %v322
      %vm325 = vcmask 31744
      %v327 = vsel %vm325, %v318, 0
      %v330 = vsel %vm325, %v319, 0
      %v333 = vsel %vm325, %v320, 0
      %v336 = vsel %vm325, %v321, 0
      %vm338 = vcmask 1043456
      %v339 = vsel %vm338, %v322, 0
      %v341 = vsel %vm338, %v324, 0
      %343 = vmatprep.subr.mxu0 0.0
      %344 = vmatpush1.msra.mxu0 0.0
      %345 = vmatprep.subr.mxu0 0.0
      %346 = vmatpush1.msra.mxu0 0.0
      %347 = vmatprep.subr.mxu0 0.0
      %348 = vmatpush1.msra.mxu0 0.0
      %349 = vmatprep.subr.mxu0 0.0
      %350 = vmatpush1.msra.mxu0 0.0
      %351 = vmatprep.subr.mxu0 0.0
      %352 = vmatpush1.msra.mxu0 0.0
      %353 = vmatprep.subr.mxu0 0.0
      %354 = vmatpush1.msra.mxu0 0.0
      %355 = vmatprep.subr.mxu0 0.0
      %356 = vmatpush1.msra.mxu0 0.0
      %357 = vmatprep.subr.mxu0 0.0
      %358 = vmatpush1.msra.mxu0 0.0
      %359 = vmatprep.subr.mxu0 0.0
      %360 = vmatpush1.msra.mxu0 0.0
      %361 = vmatprep.subr.mxu0 0.0
      %362 = vmatpush1.msra.mxu0 0.0
      %363 = vmatprep.subr.mxu0 0.0
      %364 = vmatpush1.msra.mxu0 0.0
      %365 = vmatprep.subr.mxu0 0.0
      %366 = vmatpush1.msra.mxu0 0.0
      %367 = vmatprep.subr.mxu0 0.0
      %368 = vmatpush1.msra.mxu0 0.0
      %369 = vmatprep.subr.mxu0 0.0
      %370 = vmatpush1.msra.mxu0 0.0
      %371 = vmatprep.subr.mxu0 0.0
      %372 = vmatpush1.msra.mxu0 0.0
      %373 = vmatprep.subr.mxu0 %v341
      %374 = vmatpush1.msra.mxu0 %v339
      %375 = vmatprep.subr.mxu0 0.0
      %376 = vmatpush2.msra.mxu0 0.0
      %377 = vmatprep.subr.mxu0 0.0
      %378 = vmatpush2.msra.mxu0 0.0
      %379 = vmatprep.subr.mxu0 0.0
      %380 = vmatpush2.msra.mxu0 0.0
      %381 = vmatprep.subr.mxu0 0.0
      %382 = vmatpush2.msra.mxu0 0.0
      %383 = vmatprep.subr.mxu0 0.0
      %384 = vmatpush2.msra.mxu0 0.0
      %385 = vmatprep.subr.mxu0 0.0
      %386 = vmatpush2.msra.mxu0 0.0
      %387 = vmatprep.subr.mxu0 0.0
      %388 = vmatpush2.msra.mxu0 0.0
      %389 = vmatprep.subr.mxu0 0.0
      %390 = vmatpush2.msra.mxu0 0.0
      %391 = vmatprep.subr.mxu0 0.0
      %392 = vmatpush2.msra.mxu0 0.0
      %393 = vmatprep.subr.mxu0 0.0
      %394 = vmatpush2.msra.mxu0 0.0
      %395 = vmatprep.subr.mxu0 0.0
      %396 = vmatpush2.msra.mxu0 0.0
      %397 = vmatprep.subr.mxu0 0.0
      %398 = vmatpush2.msra.mxu0 0.0
      %399 = vmatprep.subr.mxu0 0.0
      %400 = vmatpush2.msra.mxu0 0.0
      %401 = vmatprep.subr.mxu0 0.0
      %402 = vmatpush2.msra.mxu0 0.0
      %403 = vmatprep.subr.mxu0 0.0
      %404 = vmatpush2.msra.mxu0 0.0
      %405 = vmatprep.subr.mxu0 0.0
      %406 = vmatpush2.msra.mxu0 0.0
      %407 = vmatprep.mubr.f32.mxu0 0.0
      %408 = vmatmul.mubr.f32.gmra.mxu0 %v327
      %v409 = vpop.f32.mrf.mxu0
      %v410 = vadd.f32 0.0, %v409
      %v411 = vpop.f32.mrf.mxu0
      %v412 = vadd.f32 0.0, %v411
      %413 = vmatprep.mubr.f32.mxu0 0.0
      %414 = vmatmul.mubr.f32.gmra.mxu0 %v330
      %v415 = vpop.f32.mrf.mxu0
      %v416 = vadd.f32 0.0, %v415
      %v417 = vpop.f32.mrf.mxu0
      %v418 = vadd.f32 0.0, %v417
      %419 = vmatprep.mubr.f32.mxu0 0.0
      %420 = vmatmul.mubr.f32.gmra.mxu0 %v333
      %v421 = vpop.f32.mrf.mxu0
      %v422 = vadd.f32 0.0, %v421
      %v423 = vpop.f32.mrf.mxu0
      %v424 = vadd.f32 0.0, %v423
      %425 = vmatprep.mubr.f32.mxu0 0.0
      %426 = vmatmul.mubr.f32.gmra.mxu0 %v336
      %v427 = vpop.f32.mrf.mxu0
      %v428 = vadd.f32 0.0, %v427
      %v429 = vpop.f32.mrf.mxu0
      %v430 = vadd.f32 0.0, %v429
      %431 = vdwg.mxu0
      %v432 = vld [vmem:[%s2] sm:$0xff]
      %v433 = vld [vmem:[%s2 + $0x8] sm:$0xff]
      %v434 = vld [vmem:[%s2 + $0x10] sm:$0xff]
      %v435 = vld [vmem:[%s2 + $0x18] sm:$0xff]
      %437 = vset.pattern.permute.xlu0 0
      %438 = vperm.xlu0 %437, %v432
      %v439 = vpop.permute.xlu0 %438
      %442 = vset.pattern.permute.xlu0 0
      %443 = vperm.xlu0 %442, %v433
      %v444 = vpop.permute.xlu0 %443
      %447 = vset.pattern.permute.xlu0 0
      %448 = vperm.xlu0 %447, %v434
      %v449 = vpop.permute.xlu0 %448
      %452 = vset.pattern.permute.xlu0 0
      %453 = vperm.xlu0 %452, %v435
      %v454 = vpop.permute.xlu0 %453
      %v456 = vmul.f32 %v410, %v439
      %v457 = vmul.f32 %v412, %v439
      %v458 = vmul.f32 %v416, %v444
      %v459 = vmul.f32 %v418, %v444
      %v460 = vmul.f32 %v422, %v449
      %v461 = vmul.f32 %v424, %v449
      %v462 = vmul.f32 %v428, %v454
      %v463 = vmul.f32 %v430, %v454
      %v464 = vld [vmem:[%s3] sm:$0xff]
      %v465 = vld [vmem:[%s3 + $0x8] sm:$0xff]
      %v466 = vld [vmem:[%s3 + $0x10] sm:$0xff]
      %v467 = vld [vmem:[%s3 + $0x18] sm:$0xff]
      %469 = vset.pattern.permute.xlu0 0
      %470 = vperm.xlu0 %469, %v464
      %v471 = vpop.permute.xlu0 %470
      %474 = vset.pattern.permute.xlu0 0
      %475 = vperm.xlu0 %474, %v465
      %v476 = vpop.permute.xlu0 %475
      %479 = vset.pattern.permute.xlu0 0
      %480 = vperm.xlu0 %479, %v466
      %v481 = vpop.permute.xlu0 %480
      %484 = vset.pattern.permute.xlu0 0
      %485 = vperm.xlu0 %484, %v467
      %v486 = vpop.permute.xlu0 %485
      %v488 = vadd.f32 %v456, %v471
      %v489 = vadd.f32 %v457, %v471
      %v490 = vadd.f32 %v458, %v476
      %v491 = vadd.f32 %v459, %v476
      %v492 = vadd.f32 %v460, %v481
      %v493 = vadd.f32 %v461, %v481
      %v494 = vadd.f32 %v462, %v486
      %v495 = vadd.f32 %v463, %v486
      %v496 = vmax.f32 %v488, 0.0
      %v497 = vmax.f32 %v489, 0.0
      %v498 = vmax.f32 %v490, 0.0
      %v499 = vmax.f32 %v491, 0.0
      %v500 = vmax.f32 %v492, 0.0
      %v501 = vmax.f32 %v493, 0.0
      %v502 = vmax.f32 %v494, 0.0
      %v503 = vmax.f32 %v495, 0.0
      %v504 = vld [vmem:[%s4] sm:$0xff]
      %vm505 = vcmask 261120
      %v507 = vsel %vm505, %v504, 0
      %509 = vmatprep.subr.mxu0 0.0
      %510 = vmatpush1.msra.mxu0 0.0
      %511 = vmatprep.subr.mxu0 0.0
      %512 = vmatpush1.msra.mxu0 0.0
      %513 = vmatprep.subr.mxu0 0.0
      %514 = vmatpush1.msra.mxu0 0.0
      %515 = vmatprep.subr.mxu0 0.0
      %516 = vmatpush1.msra.mxu0 0.0
      %517 = vmatprep.subr.mxu0 0.0
      %518 = vmatpush1.msra.mxu0 0.0
      %519 = vmatprep.subr.mxu0 0.0
      %520 = vmatpush1.msra.mxu0 0.0
      %521 = vmatprep.subr.mxu0 0.0
      %522 = vmatpush1.msra.mxu0 0.0
      %523 = vmatprep.subr.mxu0 0.0
      %524 = vmatpush1.msra.mxu0 0.0
      %525 = vmatprep.subr.mxu0 0.0
      %526 = vmatpush1.msra.mxu0 0.0
      %527 = vmatprep.subr.mxu0 0.0
      %528 = vmatpush1.msra.mxu0 0.0
      %529 = vmatprep.subr.mxu0 0.0
      %530 = vmatpush1.msra.mxu0 0.0
      %531 = vmatprep.subr.mxu0 0.0
      %532 = vmatpush1.msra.mxu0 0.0
      %533 = vmatprep.subr.mxu0 %v503
      %534 = vmatpush1.msra.mxu0 %v502
      %535 = vmatprep.subr.mxu0 %v501
      %536 = vmatpush1.msra.mxu0 %v500
      %537 = vmatprep.subr.mxu0 %v499
      %538 = vmatpush1.msra.mxu0 %v498
      %539 = vmatprep.subr.mxu0 %v497
      %540 = vmatpush1.msra.mxu0 %v496
      %541 = vmatprep.subr.mxu0 0.0
      %542 = vmatpush2.msra.mxu0 0.0
      %543 = vmatprep.subr.mxu0 0.0
      %544 = vmatpush2.msra.mxu0 0.0
      %545 = vmatprep.subr.mxu0 0.0
      %546 = vmatpush2.msra.mxu0 0.0
      %547 = vmatprep.subr.mxu0 0.0
      %548 = vmatpush2.msra.mxu0 0.0
      %549 = vmatprep.subr.mxu0 0.0
      %550 = vmatpush2.msra.mxu0 0.0
      %551 = vmatprep.subr.mxu0 0.0
      %552 = vmatpush2.msra.mxu0 0.0
      %553 = vmatprep.subr.mxu0 0.0
      %554 = vmatpush2.msra.mxu0 0.0
      %555 = vmatprep.subr.mxu0 0.0
      %556 = vmatpush2.msra.mxu0 0.0
      %557 = vmatprep.subr.mxu0 0.0
      %558 = vmatpush2.msra.mxu0 0.0
      %559 = vmatprep.subr.mxu0 0.0
      %560 = vmatpush2.msra.mxu0 0.0
      %561 = vmatprep.subr.mxu0 0.0
      %562 = vmatpush2.msra.mxu0 0.0
      %563 = vmatprep.subr.mxu0 0.0
      %564 = vmatpush2.msra.mxu0 0.0
      %565 = vmatprep.subr.mxu0 0.0
      %566 = vmatpush2.msra.mxu0 0.0
      %567 = vmatprep.subr.mxu0 0.0
      %568 = vmatpush2.msra.mxu0 0.0
      %569 = vmatprep.subr.mxu0 0.0
      %570 = vmatpush2.msra.mxu0 0.0
      %571 = vmatprep.subr.mxu0 0.0
      %572 = vmatpush2.msra.mxu0 0.0
      %573 = vmatprep.mubr.f32.mxu0 0.0
      %574 = vmatmul.mubr.f32.gmra.mxu0 %v507
      %v575 = vpop.f32.mrf.mxu0
      %v576 = vadd.f32 0.0, %v575
      %v577 = vpop.f32.mrf.mxu0
      %v578 = vadd.f32 0.0, %v577
      %579 = vdwg.mxu0
      %v580 = vld [vmem:[%s5] sm:$0xff]
      %582 = vset.pattern.permute.xlu0 0
      %583 = vperm.xlu0 %582, %v580
      %v584 = vpop.permute.xlu0 %583
      %v586 = vmul.f32 %v576, %v584
      %v587 = vmul.f32 %v578, %v584
      %v588 = vld [vmem:[%s6] sm:$0xff]
      %590 = vset.pattern.permute.xlu0 0
      %591 = vperm.xlu0 %590, %v588
      %v592 = vpop.permute.xlu0 %591
      %v594 = vadd.f32 %v586, %v592
      %v595 = vadd.f32 %v587, %v592
      %v596 = vmax.f32 %v594, 0.0
      %v597 = vmax.f32 %v595, 0.0
      %598 = vst [vmem:[%s316] sm:$0xff] %v596
      %599 = vst [vmem:[%s316 + $0x8] sm:$0xff] %v597
      %s600 = smul.u32 2, %s23
      %p601 = scmp.lt.s32.totalorder %s22, 1
      %s602 = scalar_select %p601, %s22, 1
      %p603 = scmp.lt.s32.totalorder %s600, 1
      %s604 = scalar_select %p603, %s600, 1
      %s605 = smul.addr %s602, 2
      %s606 = sadd.s32 %s604, %s605
      %s607 = smul.addr %s606, 8
      %s608 = scalar_lea.vmem %s7, %s607
      // Predicated region
      $region49: #{mlp_pallas.5} parent=47 // pred_check
        %p609 = pneg %p204
      $region50: #{mlp_pallas.5} parent=47 // pred_check_branch
        %611 = sbr.rel (%p609) target = $region52
      $region51: #{mlp_pallas.5} parent=47 // pred_region
        %s612 = smul.u32 2, %s23
      $region52: #{mlp_pallas.5} parent=47 // pred_fallthru
        _
    $region48: #{mlp_pallas.5} parent=5 // pred_fallthru
      _
    %p613 = scmp.le.s32.totalorder 2, %s13
    // Predicated region
    $region53: #{mlp_pallas.5} parent=5 // pred_check
      %p614 = pneg %p613
    $region54: #{mlp_pallas.5} parent=5 // pred_check_branch
      %616 = sbr.rel (%p614) target = $region56
    $region55: #{mlp_pallas.5} parent=5 // pred_region
      %s617 = ssub.s32 %s13, 2
      // Predicated region
      $region57: #{mlp_pallas.5} parent=55 // pred_check
        %p618 = pneg %p210
      $region58: #{mlp_pallas.5} parent=55 // pred_check_branch
        %620 = sbr.rel (%p618) target = $region60
      $region59: #{mlp_pallas.5} parent=55 // pred_region
        %s621 = smul.u32 2, %s25
        %p622 = scmp.lt.s32.totalorder %s24, 1
        %s623 = scalar_select %p622, %s24, 1
        %p624 = scmp.lt.s32.totalorder %s621, 1
        %s625 = scalar_select %p624, %s621, 1
        %s626 = smul.addr %s623, 2
        %s627 = sadd.s32 %s625, %s626
        %s628 = smul.addr %s627, 8
        %s629 = scalar_lea.vmem %s7, %s628
      $region60: #{mlp_pallas.5} parent=55 // pred_fallthru
        _
    $region56: #{mlp_pallas.5} parent=5 // pred_fallthru
      _
  $region6: #{mlp_pallas.5} parent=0 // loop_footer
    %s17 = sadd.s32 1, %s13
  $region7: #{mlp_pallas.5} parent=0 // loop_footer_branch
    %12 = sbr.rel target = $region3
  $region8: #{mlp_pallas.5} parent=0 // loop_exit
    _

</llo_original>
